<compile_context>
chip_gen: v5e
topology: v5e:2x2
jax: 0.10.0
libtpu: 0.0.40
codegen_flags: <defaults>
</compile_context>

<pallas_src>
import functools

import jax
import jax.numpy as jnp
from jax import lax
from jax.experimental import pallas as pl
from jax.experimental.pallas import tpu as pltpu


_CHUNK = 128   # rows per in-kernel compute chunk (bounds vreg live ranges)
_LANE = 128
_SUB = 8


def _round_up(v, m):
    return ((v + m - 1) // m) * m


def _vmem_tile_bytes(rows, cols, dtype_bytes=4):
    """Bytes one (rows, cols) f32 buffer actually occupies in VMEM ((8,128) tiling)."""
    return _round_up(rows, _SUB) * _round_up(cols, _LANE) * dtype_bytes


def _mlp_kernel(x_ref, w1_ref, b1_ref, w2_ref, b2_ref, w3_ref, b3_ref,
                wo_ref, bo_ref, out_ref, *, n_chunks):
    """One batch tile: loop over fixed 128-row chunks so live vregs stay bounded
    no matter how large the DMA tile (TB) grows."""

    def chunk(c, carry):
        r0 = pl.multiple_of(c * _CHUNK, _CHUNK)
        x = x_ref[pl.ds(r0, _CHUNK), :]

        # hidden_1 = sigmoid(x @ W1 + b1)   (residual kept in vregs: 16 vregs)
        h1 = jax.nn.sigmoid(
            jnp.dot(x, w1_ref[...], preferred_element_type=jnp.float32)
            + b1_ref[...])

        # hidden_2 = sigmoid(h1 @ W2 + b2)
        h2 = jax.nn.sigmoid(
            jnp.dot(h1, w2_ref[...], preferred_element_type=jnp.float32)
            + b2_ref[...])

        # hidden_3 = sigmoid(h2 @ W3 + b3 + h1)   (residual connection)
        h3 = jax.nn.sigmoid(
            jnp.dot(h2, w3_ref[...], preferred_element_type=jnp.float32)
            + b3_ref[...] + h1)

        # output = h3 @ Wo + bo  -> narrow (CHUNK, O) store; HBM bytes = 16 B/row.
        out_ref[pl.ds(r0, _CHUNK), :] = (
            jnp.dot(h3, wo_ref[...], preferred_element_type=jnp.float32)
            + bo_ref[...]).astype(out_ref.dtype)
        return carry

    lax.fori_loop(0, n_chunks, chunk, 0)


def resnet_basic_perceptron(x, params, *, block_b=4096):
    """x: [B, input_size] float32. Returns flattened output [B * output_size]."""
    w1, b1, w2, b2, w3, b3, wo, bo = params
    B, I = x.shape
    H = w1.shape[1]
    O = wo.shape[1]
    f32 = 4

    # ---- Batch tile selection.
    #  * multiple of _CHUNK so the in-kernel chunk loop tiles evenly,
    #  * >= 2 grid steps whenever B allows it (v7x megacore: 2 TensorCores),
    #  * capped by block_b and by a VMEM budget that stays safe on v7x (64 MiB).
    max_tb = max(_CHUNK, (block_b // _CHUNK) * _CHUNK)
    # per-row bytes of double-buffered x + out tiles (lane-padded to 128)
    per_row = 2 * (_round_up(I, _LANE) + _round_up(O, _LANE)) * f32
    vmem_budget = 24 << 20                       # keep pipelined tiles <= ~24 MiB
    tb_vmem_cap = max(_CHUNK, ((vmem_budget // per_row) // _CHUNK) * _CHUNK)
    if B > _CHUNK:
        half = _round_up((B + 1) // 2, _CHUNK)   # aim for >= 2 grid steps
        TB = min(max_tb, tb_vmem_cap, half)
    else:
        TB = _CHUNK
    B_pad = _round_up(B, TB)
    if B_pad != B:
        x = jnp.pad(x, ((0, B_pad - B), (0, 0)))
    grid = (B_pad // TB,)
    n_chunks = TB // _CHUNK

    # ---- Honest VMEM accounting ((8,128)-padded buffers, 2 pipeline bufs each).
    vmem_needed = (
        2 * _vmem_tile_bytes(TB, I)                       # x tile, double-buffered
        + 2 * _vmem_tile_bytes(TB, O)                     # out tile, double-buffered
        + 2 * (_vmem_tile_bytes(I, H) + 2 * _vmem_tile_bytes(H, H)
               + _vmem_tile_bytes(H, O))                  # resident weights
        + 2 * (3 * _vmem_tile_bytes(1, H) + _vmem_tile_bytes(1, O)))  # biases
    vmem_limit = int(min(max(vmem_needed + (8 << 20), 16 << 20), 32 << 20))

    const = lambda shape: pl.BlockSpec(shape, lambda i: tuple(0 for _ in shape))

    out_2d = pl.pallas_call(
        functools.partial(_mlp_kernel, n_chunks=n_chunks),
        out_shape=jax.ShapeDtypeStruct((B_pad, O), jnp.float32),
        grid=grid,
        in_specs=[
            pl.BlockSpec((TB, I), lambda i: (i, 0)),       # x: tiled over batch
            const((I, H)), const((1, H)),                  # W1, b1 (resident)
            const((H, H)), const((1, H)),                  # W2, b2 (resident)
            const((H, H)), const((1, H)),                  # W3, b3 (resident)
            const((H, O)), const((1, O)),                  # Wo, bo (resident)
        ],
        out_specs=pl.BlockSpec((TB, O), lambda i: (i, 0)),
        compiler_params=pltpu.CompilerParams(
            dimension_semantics=("parallel",),             # megacore: split batch tiles
            vmem_limit_bytes=vmem_limit),
    )(x, w1, b1, w2, b2, w3, b3, wo, bo)

    # Strip batch padding (if any), then flatten (PyTorch's output.view(-1)).
    out_2d = out_2d if B_pad == B else out_2d[:B]
    return out_2d.reshape(-1)


def init_params(key, input_size, hidden_size, output_size):
    """Deterministic synthetic parameter init (Kaiming-uniform-like bounds)."""
    ks = jax.random.split(key, 8)

    def lin(kw, kb, fan_in, fan_out):
        bound = 1.0 / jnp.sqrt(fan_in)
        # weight stored pre-transposed: [fan_in, fan_out]  (y = x @ W + b)
        w = jax.random.uniform(kw, (fan_in, fan_out), jnp.float32, -bound, bound)
        b = jax.random.uniform(kb, (1, fan_out), jnp.float32, -bound, bound)
        return w, b

    w1, b1 = lin(ks[0], ks[1], input_size, hidden_size)
    w2, b2 = lin(ks[2], ks[3], hidden_size, hidden_size)
    w3, b3 = lin(ks[4], ks[5], hidden_size, hidden_size)
    wo, bo = lin(ks[6], ks[7], hidden_size, output_size)
    return (w1, b1, w2, b2, w3, b3, wo, bo)


def reference_forward(x, params):
    """Pure-JAX reference matching the PyTorch module exactly."""
    w1, b1, w2, b2, w3, b3, wo, bo = params
    h1 = jax.nn.sigmoid(x @ w1 + b1)
    h2 = jax.nn.sigmoid(h1 @ w2 + b2)
    h3 = jax.nn.sigmoid(h2 @ w3 + b3 + h1)
    out = h3 @ wo + bo
    return out.reshape(-1)


if __name__ == "__main__":
    input_size, hidden_size, output_size = 16, 32, 4

    key = jax.random.PRNGKey(0)
    kx1, kx2, kx3, kp = jax.random.split(key, 4)
    params = init_params(kp, input_size, hidden_size, output_size)

    # (a) B=256 -> TB=128, grid=(2,): pipelined x/out DMAs, megacore-splittable.
    x1 = jax.random.normal(kx1, (256, input_size), jnp.float32)
    out1 = jax.block_until_ready(resnet_basic_perceptron(x1, params))
    ref1 = reference_forward(x1, params)
    assert out1.shape == (256 * output_size,), out1.shape
    assert jnp.allclose(out1, ref1, atol=1e-5, rtol=1e-5), \
        f"max abs err = {jnp.max(jnp.abs(out1 - ref1))}"

    # (b) ragged B=200 -> zero-padded to 256 rows, sliced back afterwards.
    x2 = jax.random.normal(kx2, (200, input_size), jnp.float32)
    out2 = jax.block_until_ready(resnet_basic_perceptron(x2, params))
    ref2 = reference_forward(x2, params)
    assert out2.shape == (200 * output_size,), out2.shape
    assert jnp.allclose(out2, ref2, atol=1e-5, rtol=1e-5), \
        f"max abs err = {jnp.max(jnp.abs(out2 - ref2))}"

    # (c) B=1024 with block_b=512 -> TB=512, grid=(2,), 4 compute chunks per tile:
    #     exercises the chunked in-kernel fori_loop with a larger DMA tile.
    x3 = jax.random.normal(kx3, (1024, input_size), jnp.float32)
    out3 = jax.block_until_ready(resnet_basic_perceptron(x3, params, block_b=512))
    ref3 = reference_forward(x3, params)
    assert out3.shape == (1024 * output_size,), out3.shape
    assert jnp.allclose(out3, ref3, atol=1e-5, rtol=1e-5), \
        f"max abs err = {jnp.max(jnp.abs(out3 - ref3))}"

    print("KERNEL_OK")
</pallas_src>

<mosaic_0001>
module attributes {stable_mosaic.version = 11 : i64} {
  func.func @_mlp_kernel(%arg0: i32, %arg1: memref<128x16xf32, #tpu.memory_space<vmem>>, %arg2: memref<16x32xf32, #tpu.memory_space<vmem>>, %arg3: memref<1x32xf32, #tpu.memory_space<vmem>>, %arg4: memref<32x32xf32, #tpu.memory_space<vmem>>, %arg5: memref<1x32xf32, #tpu.memory_space<vmem>>, %arg6: memref<32x32xf32, #tpu.memory_space<vmem>>, %arg7: memref<1x32xf32, #tpu.memory_space<vmem>>, %arg8: memref<32x4xf32, #tpu.memory_space<vmem>>, %arg9: memref<1x4xf32, #tpu.memory_space<vmem>>, %arg10: memref<128x4xf32, #tpu.memory_space<vmem>>) attributes {dimension_semantics = [#tpu.dimension_semantics<parallel>], iteration_bounds = array<i64: 2>, scalar_prefetch = 0 : i64, scratch_operands = 0 : i64, tpu.core_type = #tpu.core_type<tc>, window_params = [{transform_indices = @transform_0, window_bounds = array<i64: 128, 16>}, {pipeline_mode = #tpu.pipeline_mode<synchronous>, transform_indices = @transform_1, window_bounds = array<i64: 16, 32>}, {pipeline_mode = #tpu.pipeline_mode<synchronous>, transform_indices = @transform_2, window_bounds = array<i64: 1, 32>}, {pipeline_mode = #tpu.pipeline_mode<synchronous>, transform_indices = @transform_3, window_bounds = array<i64: 32, 32>}, {pipeline_mode = #tpu.pipeline_mode<synchronous>, transform_indices = @transform_4, window_bounds = array<i64: 1, 32>}, {pipeline_mode = #tpu.pipeline_mode<synchronous>, transform_indices = @transform_5, window_bounds = array<i64: 32, 32>}, {pipeline_mode = #tpu.pipeline_mode<synchronous>, transform_indices = @transform_6, window_bounds = array<i64: 1, 32>}, {pipeline_mode = #tpu.pipeline_mode<synchronous>, transform_indices = @transform_7, window_bounds = array<i64: 32, 4>}, {pipeline_mode = #tpu.pipeline_mode<synchronous>, transform_indices = @transform_8, window_bounds = array<i64: 1, 4>}, {transform_indices = @transform_9, window_bounds = array<i64: 128, 4>}]} {
    %c0_i32 = arith.constant 0 : i32
    %c128_i32 = arith.constant 128 : i32
    %0 = arith.muli %c0_i32, %c128_i32 : i32
    %1 = tpu.assume_multiple %0, 128 : i32
    %2 = arith.index_cast %1 : i32 to index
    %c0 = arith.constant 0 : index
    %3 = vector.load %arg1[%2, %c0] : memref<128x16xf32, #tpu.memory_space<vmem>>, vector<128x16xf32>
    %c0_0 = arith.constant 0 : index
    %c0_1 = arith.constant 0 : index
    %4 = vector.load %arg2[%c0_0, %c0_1] : memref<16x32xf32, #tpu.memory_space<vmem>>, vector<16x32xf32>
    %cst = arith.constant dense<0.000000e+00> : vector<128x32xf32>
    %5 = tpu.matmul %3, %4, %cst {dimension_numbers = #tpu.dot_dimension_numbers<[1], [0], [0], [1], [0, 0, 1, 1], [], []>} : vector<128x16xf32>, vector<16x32xf32>, vector<128x32xf32> -> vector<128x32xf32>
    %c0_2 = arith.constant 0 : index
    %c0_3 = arith.constant 0 : index
    %6 = vector.load %arg3[%c0_2, %c0_3] : memref<1x32xf32, #tpu.memory_space<vmem>>, vector<1x32xf32>
    %7 = vector.broadcast %6 : vector<1x32xf32> to vector<128x32xf32>
    %8 = arith.addf %5, %7 : vector<128x32xf32>
    %9 = arith.negf %8 : vector<128x32xf32>
    %10 = math.exp %9 : vector<128x32xf32>
    %cst_4 = arith.constant 1.000000e+00 : f32
    %11 = vector.broadcast %cst_4 : f32 to vector<128x32xf32>
    %12 = arith.addf %11, %10 : vector<128x32xf32>
    %13 = arith.divf %11, %12 : vector<128x32xf32>
    %c0_5 = arith.constant 0 : index
    %c0_6 = arith.constant 0 : index
    %14 = vector.load %arg4[%c0_5, %c0_6] : memref<32x32xf32, #tpu.memory_space<vmem>>, vector<32x32xf32>
    %cst_7 = arith.constant dense<0.000000e+00> : vector<128x32xf32>
    %15 = tpu.matmul %13, %14, %cst_7 {dimension_numbers = #tpu.dot_dimension_numbers<[1], [0], [0], [1], [0, 0, 1, 1], [], []>} : vector<128x32xf32>, vector<32x32xf32>, vector<128x32xf32> -> vector<128x32xf32>
    %c0_8 = arith.constant 0 : index
    %c0_9 = arith.constant 0 : index
    %16 = vector.load %arg5[%c0_8, %c0_9] : memref<1x32xf32, #tpu.memory_space<vmem>>, vector<1x32xf32>
    %17 = vector.broadcast %16 : vector<1x32xf32> to vector<128x32xf32>
    %18 = arith.addf %15, %17 : vector<128x32xf32>
    %19 = arith.negf %18 : vector<128x32xf32>
    %20 = math.exp %19 : vector<128x32xf32>
    %cst_10 = arith.constant 1.000000e+00 : f32
    %21 = vector.broadcast %cst_10 : f32 to vector<128x32xf32>
    %22 = arith.addf %21, %20 : vector<128x32xf32>
    %23 = arith.divf %21, %22 : vector<128x32xf32>
    %c0_11 = arith.constant 0 : index
    %c0_12 = arith.constant 0 : index
    %24 = vector.load %arg6[%c0_11, %c0_12] : memref<32x32xf32, #tpu.memory_space<vmem>>, vector<32x32xf32>
    %cst_13 = arith.constant dense<0.000000e+00> : vector<128x32xf32>
    %25 = tpu.matmul %23, %24, %cst_13 {dimension_numbers = #tpu.dot_dimension_numbers<[1], [0], [0], [1], [0, 0, 1, 1], [], []>} : vector<128x32xf32>, vector<32x32xf32>, vector<128x32xf32> -> vector<128x32xf32>
    %c0_14 = arith.constant 0 : index
    %c0_15 = arith.constant 0 : index
    %26 = vector.load %arg7[%c0_14, %c0_15] : memref<1x32xf32, #tpu.memory_space<vmem>>, vector<1x32xf32>
    %27 = vector.broadcast %26 : vector<1x32xf32> to vector<128x32xf32>
    %28 = arith.addf %25, %27 : vector<128x32xf32>
    %29 = arith.addf %28, %13 : vector<128x32xf32>
    %30 = arith.negf %29 : vector<128x32xf32>
    %31 = math.exp %30 : vector<128x32xf32>
    %cst_16 = arith.constant 1.000000e+00 : f32
    %32 = vector.broadcast %cst_16 : f32 to vector<128x32xf32>
    %33 = arith.addf %32, %31 : vector<128x32xf32>
    %34 = arith.divf %32, %33 : vector<128x32xf32>
    %c0_17 = arith.constant 0 : index
    %c0_18 = arith.constant 0 : index
    %35 = vector.load %arg8[%c0_17, %c0_18] : memref<32x4xf32, #tpu.memory_space<vmem>>, vector<32x4xf32>
    %cst_19 = arith.constant dense<0.000000e+00> : vector<128x4xf32>
    %36 = tpu.matmul %34, %35, %cst_19 {dimension_numbers = #tpu.dot_dimension_numbers<[1], [0], [0], [1], [0, 0, 1, 1], [], []>} : vector<128x32xf32>, vector<32x4xf32>, vector<128x4xf32> -> vector<128x4xf32>
    %c0_20 = arith.constant 0 : index
    %c0_21 = arith.constant 0 : index
    %37 = vector.load %arg9[%c0_20, %c0_21] : memref<1x4xf32, #tpu.memory_space<vmem>>, vector<1x4xf32>
    %38 = vector.broadcast %37 : vector<1x4xf32> to vector<128x4xf32>
    %39 = arith.addf %36, %38 : vector<128x4xf32>
    %40 = arith.index_cast %1 : i32 to index
    %c0_22 = arith.constant 0 : index
    %41 = vector.load %arg10[%40, %c0_22] : memref<128x4xf32, #tpu.memory_space<vmem>>, vector<128x4xf32>
    tpu.vector_store %arg10[%40, %c0_22], %39 {strides = array<i32>} : memref<128x4xf32, #tpu.memory_space<vmem>>, vector<128x4xf32>,
    %c1_i32 = arith.constant 1 : i32
    return
  }
  func.func @transform_0(%arg0: i32) -> (i32, i32) {
    %c0_i32 = arith.constant 0 : i32
    %c0_i32_0 = arith.constant 0 : i32
    return %arg0, %c0_i32 : i32, i32
  }
  func.func @transform_1(%arg0: i32) -> (i32, i32) {
    %c0_i32 = arith.constant 0 : i32
    %c0_i32_0 = arith.constant 0 : i32
    %c0_i32_1 = arith.constant 0 : i32
    return %c0_i32, %c0_i32_0 : i32, i32
  }
  func.func @transform_2(%arg0: i32) -> (i32, i32) {
    %c0_i32 = arith.constant 0 : i32
    %c0_i32_0 = arith.constant 0 : i32
    %c0_i32_1 = arith.constant 0 : i32
    return %c0_i32, %c0_i32_0 : i32, i32
  }
  func.func @transform_3(%arg0: i32) -> (i32, i32) {
    %c0_i32 = arith.constant 0 : i32
    %c0_i32_0 = arith.constant 0 : i32
    %c0_i32_1 = arith.constant 0 : i32
    return %c0_i32, %c0_i32_0 : i32, i32
  }
  func.func @transform_4(%arg0: i32) -> (i32, i32) {
    %c0_i32 = arith.constant 0 : i32
    %c0_i32_0 = arith.constant 0 : i32
    %c0_i32_1 = arith.constant 0 : i32
    return %c0_i32, %c0_i32_0 : i32, i32
  }
  func.func @transform_5(%arg0: i32) -> (i32, i32) {
    %c0_i32 = arith.constant 0 : i32
    %c0_i32_0 = arith.constant 0 : i32
    %c0_i32_1 = arith.constant 0 : i32
    return %c0_i32, %c0_i32_0 : i32, i32
  }
  func.func @transform_6(%arg0: i32) -> (i32, i32) {
    %c0_i32 = arith.constant 0 : i32
    %c0_i32_0 = arith.constant 0 : i32
    %c0_i32_1 = arith.constant 0 : i32
    return %c0_i32, %c0_i32_0 : i32, i32
  }
  func.func @transform_7(%arg0: i32) -> (i32, i32) {
    %c0_i32 = arith.constant 0 : i32
    %c0_i32_0 = arith.constant 0 : i32
    %c0_i32_1 = arith.constant 0 : i32
    return %c0_i32, %c0_i32_0 : i32, i32
  }
  func.func @transform_8(%arg0: i32) -> (i32, i32) {
    %c0_i32 = arith.constant 0 : i32
    %c0_i32_0 = arith.constant 0 : i32
    %c0_i32_1 = arith.constant 0 : i32
    return %c0_i32, %c0_i32_0 : i32, i32
  }
  func.func @transform_9(%arg0: i32) -> (i32, i32) {
    %c0_i32 = arith.constant 0 : i32
    %c0_i32_0 = arith.constant 0 : i32
    return %arg0, %c0_i32 : i32, i32
  }
}

</mosaic_0001>

<llo_original>
// kernel: tpu_custom_call.1
$region0: #{tpu_custom_call.1}
  #allocation0 [shape = 'u32[]', space=smem, size = 0x4, offset = 0x4, fixed_abs, tag = 'smem constant byte address 0x4 - core index']
  #allocation1 [shape = 'u32[72,128]{1,0:T(1,128)}', space=vmem, size = 0x9000, scoped, tag = 'internal scratch']
  %s0 = inlined_call_operand.vmem [shape: f32[256,16], index: 0, kind: input, shape index: {}]
  %s1 = inlined_call_operand.vmem [shape: f32[16,32], index: 1, kind: input, shape index: {}]
  %s2 = inlined_call_operand.vmem [shape: f32[1,32], index: 2, kind: input, shape index: {}]
  %s3 = inlined_call_operand.vmem [shape: f32[32,32], index: 3, kind: input, shape index: {}]
  %s4 = inlined_call_operand.vmem [shape: f32[1,32], index: 4, kind: input, shape index: {}]
  %s5 = inlined_call_operand.vmem [shape: f32[32,32], index: 5, kind: input, shape index: {}]
  %s6 = inlined_call_operand.vmem [shape: f32[1,32], index: 6, kind: input, shape index: {}]
  %s7 = inlined_call_operand.vmem [shape: f32[32,4], index: 7, kind: input, shape index: {}]
  %s8 = inlined_call_operand.vmem [shape: f32[1,4], index: 8, kind: input, shape index: {}]
  %s9 = inlined_call_operand.vmem [shape: f32[256,4], index: 9, kind: output, shape index: {}]
  %s10 = sld [smem:[#allocation0]]
  $region69: #{tpu_custom_call.1} parent=0
    _
  %s12 = ssub.s32 1, %s10
  %s13 = scalar_select 0, %s12, %s10
  loop: start=0, step=1, limit=4
  $region2: #{tpu_custom_call.1} parent=0 // loop_pre_header
    _
  $region3: #{tpu_custom_call.1} parent=0 // loop_header
    %s15 = sphi 0, %s19
    %p16 = scmp.ge.s32.totalorder %s15, 4
    %s25 = sphi 0, %s27
    %s28 = sphi 0, %s25
    %s29 = sphi 0, %s28
    %s45 = sphi 0, %s29
    %s49 = sphi 0, %s49
    %s51 = sphi 0, %s49
    %s52 = sphi 0, %s51
    %s66 = sphi 0, %s52
    %s70 = sphi 0, %s70
    %s72 = sphi 0, %s70
    %s73 = sphi 0, %s72
    %s87 = sphi 0, %s73
    %s91 = sphi 0, %s91
    %s93 = sphi 0, %s91
    %s94 = sphi 0, %s93
    %s108 = sphi 0, %s94
    %s112 = sphi 0, %s112
    %s114 = sphi 0, %s112
    %s115 = sphi 0, %s114
    %s129 = sphi 0, %s115
    %s133 = sphi 0, %s133
    %s135 = sphi 0, %s133
    %s136 = sphi 0, %s135
    %s150 = sphi 0, %s136
    %s154 = sphi 0, %s154
    %s156 = sphi 0, %s154
    %s157 = sphi 0, %s156
    %s171 = sphi 0, %s157
    %s175 = sphi 0, %s175
    %s177 = sphi 0, %s175
    %s178 = sphi 0, %s177
    %s192 = sphi 0, %s178
    %s196 = sphi 0, %s196
    %s198 = sphi 0, %s196
    %s199 = sphi 0, %s198
    %s213 = sphi 0, %s199
    %s219 = sphi 0, %s221
    %s222 = sphi 0, %s219
    %s223 = sphi 0, %s222
    %s239 = sphi 0, %s223
  $region4: #{tpu_custom_call.1} parent=0 // loop_header_branch
    %18 = sbr.rel (%p16) target = $region8
  $region5: #{tpu_custom_call.1} parent=0 // loop_body
    %s20 = ssub.s32 %s15, 1
    %s21 = ssub.s32 %s15, 2
    %s22 = sadd.s32 %s15, 1
    %s23 = ssub.s32 %s15, %s22
    %p24 = scmp.eq.s32.totalorder %s23, 0
    %s26 = sadd.s32 %s25, 1
    %s27 = scalar_select %p24, %s25, %s26
    %p30 = pneg %p24
    %p31 = scmp.eq.s32.totalorder %s15, 1
    %p32 = por %p30, %p31
    %p33 = scmp.ne.s32.totalorder %s25, %s28
    %p34 = scmp.eq.s32.totalorder %s15, 0
    %p35 = por %p33, %p34
    %p36 = scmp.ne.s32.totalorder %s25, %s28
    %p37 = scmp.eq.s32.totalorder %s20, 1
    %p38 = por %p36, %p37
    %p39 = scmp.ne.s32.totalorder %s28, %s29
    %p40 = scmp.eq.s32.totalorder %s20, 0
    %p41 = por %p39, %p40
    %p42 = scmp.ne.s32.totalorder %s28, %s29
    %p43 = scmp.eq.s32.totalorder %s21, 1
    %p44 = por %p42, %p43
    %p46 = scmp.ne.s32.totalorder %s29, %s45
    %p47 = scmp.eq.s32.totalorder %s21, 0
    %p48 = por %p46, %p47
    %s50 = sadd.s32 %s49, 1
    %p53 = scmp.eq.s32.totalorder %s15, 1
    %p54 = scmp.ne.s32.totalorder %s49, %s51
    %p55 = scmp.eq.s32.totalorder %s15, 0
    %p56 = por %p54, %p55
    %p57 = scmp.ne.s32.totalorder %s49, %s51
    %p58 = scmp.eq.s32.totalorder %s20, 1
    %p59 = por %p57, %p58
    %p60 = scmp.ne.s32.totalorder %s51, %s52
    %p61 = scmp.eq.s32.totalorder %s20, 0
    %p62 = por %p60, %p61
    %p63 = scmp.ne.s32.totalorder %s51, %s52
    %p64 = scmp.eq.s32.totalorder %s21, 1
    %p65 = por %p63, %p64
    %p67 = scmp.ne.s32.totalorder %s52, %s66
    %p68 = scmp.eq.s32.totalorder %s21, 0
    %p69 = por %p67, %p68
    %s71 = sadd.s32 %s70, 1
    %p74 = scmp.eq.s32.totalorder %s15, 1
    %p75 = scmp.ne.s32.totalorder %s70, %s72
    %p76 = scmp.eq.s32.totalorder %s15, 0
    %p77 = por %p75, %p76
    %p78 = scmp.ne.s32.totalorder %s70, %s72
    %p79 = scmp.eq.s32.totalorder %s20, 1
    %p80 = por %p78, %p79
    %p81 = scmp.ne.s32.totalorder %s72, %s73
    %p82 = scmp.eq.s32.totalorder %s20, 0
    %p83 = por %p81, %p82
    %p84 = scmp.ne.s32.totalorder %s72, %s73
    %p85 = scmp.eq.s32.totalorder %s21, 1
    %p86 = por %p84, %p85
    %p88 = scmp.ne.s32.totalorder %s73, %s87
    %p89 = scmp.eq.s32.totalorder %s21, 0
    %p90 = por %p88, %p89
    %s92 = sadd.s32 %s91, 1
    %p95 = scmp.eq.s32.totalorder %s15, 1
    %p96 = scmp.ne.s32.totalorder %s91, %s93
    %p97 = scmp.eq.s32.totalorder %s15, 0
    %p98 = por %p96, %p97
    %p99 = scmp.ne.s32.totalorder %s91, %s93
    %p100 = scmp.eq.s32.totalorder %s20, 1
    %p101 = por %p99, %p100
    %p102 = scmp.ne.s32.totalorder %s93, %s94
    %p103 = scmp.eq.s32.totalorder %s20, 0
    %p104 = por %p102, %p103
    %p105 = scmp.ne.s32.totalorder %s93, %s94
    %p106 = scmp.eq.s32.totalorder %s21, 1
    %p107 = por %p105, %p106
    %p109 = scmp.ne.s32.totalorder %s94, %s108
    %p110 = scmp.eq.s32.totalorder %s21, 0
    %p111 = por %p109, %p110
    %s113 = sadd.s32 %s112, 1
    %p116 = scmp.eq.s32.totalorder %s15, 1
    %p117 = scmp.ne.s32.totalorder %s112, %s114
    %p118 = scmp.eq.s32.totalorder %s15, 0
    %p119 = por %p117, %p118
    %p120 = scmp.ne.s32.totalorder %s112, %s114
    %p121 = scmp.eq.s32.totalorder %s20, 1
    %p122 = por %p120, %p121
    %p123 = scmp.ne.s32.totalorder %s114, %s115
    %p124 = scmp.eq.s32.totalorder %s20, 0
    %p125 = por %p123, %p124
    %p126 = scmp.ne.s32.totalorder %s114, %s115
    %p127 = scmp.eq.s32.totalorder %s21, 1
    %p128 = por %p126, %p127
    %p130 = scmp.ne.s32.totalorder %s115, %s129
    %p131 = scmp.eq.s32.totalorder %s21, 0
    %p132 = por %p130, %p131
    %s134 = sadd.s32 %s133, 1
    %p137 = scmp.eq.s32.totalorder %s15, 1
    %p138 = scmp.ne.s32.totalorder %s133, %s135
    %p139 = scmp.eq.s32.totalorder %s15, 0
    %p140 = por %p138, %p139
    %p141 = scmp.ne.s32.totalorder %s133, %s135
    %p142 = scmp.eq.s32.totalorder %s20, 1
    %p143 = por %p141, %p142
    %p144 = scmp.ne.s32.totalorder %s135, %s136
    %p145 = scmp.eq.s32.totalorder %s20, 0
    %p146 = por %p144, %p145
    %p147 = scmp.ne.s32.totalorder %s135, %s136
    %p148 = scmp.eq.s32.totalorder %s21, 1
    %p149 = por %p147, %p148
    %p151 = scmp.ne.s32.totalorder %s136, %s150
    %p152 = scmp.eq.s32.totalorder %s21, 0
    %p153 = por %p151, %p152
    %s155 = sadd.s32 %s154, 1
    %p158 = scmp.eq.s32.totalorder %s15, 1
    %p159 = scmp.ne.s32.totalorder %s154, %s156
    %p160 = scmp.eq.s32.totalorder %s15, 0
    %p161 = por %p159, %p160
    %p162 = scmp.ne.s32.totalorder %s154, %s156
    %p163 = scmp.eq.s32.totalorder %s20, 1
    %p164 = por %p162, %p163
    %p165 = scmp.ne.s32.totalorder %s156, %s157
    %p166 = scmp.eq.s32.totalorder %s20, 0
    %p167 = por %p165, %p166
    %p168 = scmp.ne.s32.totalorder %s156, %s157
    %p169 = scmp.eq.s32.totalorder %s21, 1
    %p170 = por %p168, %p169
    %p172 = scmp.ne.s32.totalorder %s157, %s171
    %p173 = scmp.eq.s32.totalorder %s21, 0
    %p174 = por %p172, %p173
    %s176 = sadd.s32 %s175, 1
    %p179 = scmp.eq.s32.totalorder %s15, 1
    %p180 = scmp.ne.s32.totalorder %s175, %s177
    %p181 = scmp.eq.s32.totalorder %s15, 0
    %p182 = por %p180, %p181
    %p183 = scmp.ne.s32.totalorder %s175, %s177
    %p184 = scmp.eq.s32.totalorder %s20, 1
    %p185 = por %p183, %p184
    %p186 = scmp.ne.s32.totalorder %s177, %s178
    %p187 = scmp.eq.s32.totalorder %s20, 0
    %p188 = por %p186, %p187
    %p189 = scmp.ne.s32.totalorder %s177, %s178
    %p190 = scmp.eq.s32.totalorder %s21, 1
    %p191 = por %p189, %p190
    %p193 = scmp.ne.s32.totalorder %s178, %s192
    %p194 = scmp.eq.s32.totalorder %s21, 0
    %p195 = por %p193, %p194
    %s197 = sadd.s32 %s196, 1
    %p200 = scmp.eq.s32.totalorder %s15, 1
    %p201 = scmp.ne.s32.totalorder %s196, %s198
    %p202 = scmp.eq.s32.totalorder %s15, 0
    %p203 = por %p201, %p202
    %p204 = scmp.ne.s32.totalorder %s196, %s198
    %p205 = scmp.eq.s32.totalorder %s20, 1
    %p206 = por %p204, %p205
    %p207 = scmp.ne.s32.totalorder %s198, %s199
    %p208 = scmp.eq.s32.totalorder %s20, 0
    %p209 = por %p207, %p208
    %p210 = scmp.ne.s32.totalorder %s198, %s199
    %p211 = scmp.eq.s32.totalorder %s21, 1
    %p212 = por %p210, %p211
    %p214 = scmp.ne.s32.totalorder %s199, %s213
    %p215 = scmp.eq.s32.totalorder %s21, 0
    %p216 = por %p214, %p215
    %s217 = ssub.s32 %s15, %s22
    %p218 = scmp.eq.s32.totalorder %s217, 0
    %s220 = sadd.s32 %s219, 1
    %s221 = scalar_select %p218, %s219, %s220
    %p224 = pneg %p218
    %p225 = scmp.eq.s32.totalorder %s15, 1
    %p226 = por %p224, %p225
    %p227 = scmp.ne.s32.totalorder %s219, %s222
    %p228 = scmp.eq.s32.totalorder %s15, 0
    %p229 = por %p227, %p228
    %p230 = scmp.ne.s32.totalorder %s219, %s222
    %p231 = scmp.eq.s32.totalorder %s20, 1
    %p232 = por %p230, %p231
    %p233 = scmp.ne.s32.totalorder %s222, %s223
    %p234 = scmp.eq.s32.totalorder %s20, 0
    %p235 = por %p233, %p234
    %p236 = scmp.ne.s32.totalorder %s222, %s223
    %p237 = scmp.eq.s32.totalorder %s21, 1
    %p238 = por %p236, %p237
    %p240 = scmp.ne.s32.totalorder %s223, %s239
    %p241 = scmp.eq.s32.totalorder %s21, 0
    %p242 = por %p240, %p241
    %p243 = scmp.le.s32.totalorder 1, %s15
    %p244 = scmp.lt.s32.totalorder %s15, 3
    %p245 = pnand %p243, %p244
    %p246 = pneg %p245
    // Predicated region
    $region9: #{tpu_custom_call.1} parent=5 // pred_check
      _
    $region10: #{tpu_custom_call.1} parent=5 // pred_check_branch
      %248 = sbr.rel (%p245) target = $region12
    $region11: #{tpu_custom_call.1} parent=5 // pred_region
      %s249 = ssub.s32 %s15, 1
      // Predicated region
      $region13: #{tpu_custom_call.1} parent=11 // pred_check
        %p250 = pneg %p62
      $region14: #{tpu_custom_call.1} parent=11 // pred_check_branch
        %252 = sbr.rel (%p250) target = $region16
      $region15: #{tpu_custom_call.1} parent=11 // pred_region
        _
      $region16: #{tpu_custom_call.1} parent=11 // pred_fallthru
        _
      // Predicated region
      $region17: #{tpu_custom_call.1} parent=11 // pred_check
        %p253 = pneg %p83
      $region18: #{tpu_custom_call.1} parent=11 // pred_check_branch
        %255 = sbr.rel (%p253) target = $region20
      $region19: #{tpu_custom_call.1} parent=11 // pred_region
        _
      $region20: #{tpu_custom_call.1} parent=11 // pred_fallthru
        _
      // Predicated region
      $region21: #{tpu_custom_call.1} parent=11 // pred_check
        %p256 = pneg %p104
      $region22: #{tpu_custom_call.1} parent=11 // pred_check_branch
        %258 = sbr.rel (%p256) target = $region24
      $region23: #{tpu_custom_call.1} parent=11 // pred_region
        _
      $region24: #{tpu_custom_call.1} parent=11 // pred_fallthru
        _
      // Predicated region
      $region25: #{tpu_custom_call.1} parent=11 // pred_check
        %p259 = pneg %p125
      $region26: #{tpu_custom_call.1} parent=11 // pred_check_branch
        %261 = sbr.rel (%p259) target = $region28
      $region27: #{tpu_custom_call.1} parent=11 // pred_region
        _
      $region28: #{tpu_custom_call.1} parent=11 // pred_fallthru
        _
      // Predicated region
      $region29: #{tpu_custom_call.1} parent=11 // pred_check
        %p262 = pneg %p146
      $region30: #{tpu_custom_call.1} parent=11 // pred_check_branch
        %264 = sbr.rel (%p262) target = $region32
      $region31: #{tpu_custom_call.1} parent=11 // pred_region
        _
      $region32: #{tpu_custom_call.1} parent=11 // pred_fallthru
        _
      // Predicated region
      $region33: #{tpu_custom_call.1} parent=11 // pred_check
        %p265 = pneg %p167
      $region34: #{tpu_custom_call.1} parent=11 // pred_check_branch
        %267 = sbr.rel (%p265) target = $region36
      $region35: #{tpu_custom_call.1} parent=11 // pred_region
        _
      $region36: #{tpu_custom_call.1} parent=11 // pred_fallthru
        _
      // Predicated region
      $region37: #{tpu_custom_call.1} parent=11 // pred_check
        %p268 = pneg %p188
      $region38: #{tpu_custom_call.1} parent=11 // pred_check_branch
        %270 = sbr.rel (%p268) target = $region40
      $region39: #{tpu_custom_call.1} parent=11 // pred_region
        _
      $region40: #{tpu_custom_call.1} parent=11 // pred_fallthru
        _
      // Predicated region
      $region41: #{tpu_custom_call.1} parent=11 // pred_check
        %p271 = pneg %p209
      $region42: #{tpu_custom_call.1} parent=11 // pred_check_branch
        %273 = sbr.rel (%p271) target = $region44
      $region43: #{tpu_custom_call.1} parent=11 // pred_region
        _
      $region44: #{tpu_custom_call.1} parent=11 // pred_fallthru
        _
    $region12: #{tpu_custom_call.1} parent=5 // pred_fallthru
      _
    %p274 = scmp.lt.s32.totalorder %s15, 2
    // Predicated region
    $region45: #{tpu_custom_call.1} parent=5 // pred_check
      %p275 = pneg %p274
    $region46: #{tpu_custom_call.1} parent=5 // pred_check_branch
      %277 = sbr.rel (%p275) target = $region48
    $region47: #{tpu_custom_call.1} parent=5 // pred_region
      // Predicated region
      $region49: #{tpu_custom_call.1} parent=47 // pred_check
        %p278 = pneg %p35
      $region50: #{tpu_custom_call.1} parent=47 // pred_check_branch
        %280 = sbr.rel (%p278) target = $region52
      $region51: #{tpu_custom_call.1} parent=47 // pred_region
        %s281 = smul.u32 16, %s15
        %p282 = scmp.lt.s32.totalorder %s281, 31
        %s283 = scalar_select %p282, %s281, 31
        %s284 = smul.addr %s283, 8
        %s285 = scalar_lea.vmem %s0, %s284
        %s286 = smul.u32 16, %s15
      $region52: #{tpu_custom_call.1} parent=47 // pred_fallthru
        _
    $region48: #{tpu_custom_call.1} parent=5 // pred_fallthru
      _
    %p287 = scmp.le.s32.totalorder 1, %s15
    %p288 = scmp.lt.s32.totalorder %s15, 3
    %p289 = pnand %p287, %p288
    %p290 = pneg %p289
    // Predicated region
    $region53: #{tpu_custom_call.1} parent=5 // pred_check
      _
    $region54: #{tpu_custom_call.1} parent=5 // pred_check_branch
      %292 = sbr.rel (%p289) target = $region56
    $region55: #{tpu_custom_call.1} parent=5 // pred_region
      %s293 = ssub.s32 %s15, 1
      %s294 = smul.u32 16, %s20
      %p295 = scmp.lt.s32.totalorder %s294, 31
      %s296 = scalar_select %p295, %s294, 31
      %s297 = smul.addr %s296, 8
      %s298 = scalar_lea.vmem %s0, %s297
      %p299 = pneg %p41
      %p300 = pneg %p38
      %p301 = pneg %p62
      %p302 = pneg %p59
      %p303 = pneg %p83
      %p304 = pneg %p80
      %p305 = pneg %p104
      %p306 = pneg %p101
      %p307 = pneg %p125
      %p308 = pneg %p122
      %p309 = pneg %p146
      %p310 = pneg %p143
      %p311 = pneg %p167
      %p312 = pneg %p164
      %p313 = pneg %p188
      %p314 = pneg %p185
      %p315 = pneg %p209
      %p316 = pneg %p206
      %p317 = pneg %p235
      %p318 = pneg %p232
      %s319 = smul.u32 16, %s20
      %p320 = scmp.lt.s32.totalorder %s319, 31
      %s321 = scalar_select %p320, %s319, 31
      %s322 = smul.addr %s321, 8
      %s323 = scalar_lea.vmem %s9, %s322
      %s324 = smul.u32 16, %s20
      %p325 = scmp.lt.s32.totalorder %s324, 31
      %s326 = scalar_select %p325, %s324, 31
      %s327 = smul.addr %s326, 8
      %s328 = scalar_lea.vmem %s0, %s327
      %s329 = smul.u32 16, %s20
      %s330 = smul.u32 16, %s20
      %p331 = scmp.lt.s32.totalorder %s330, 31
      %s332 = scalar_select %p331, %s330, 31
      %s333 = smul.addr %s332, 8
      %s334 = scalar_lea.vmem %s9, %s333
      %s335 = smul.u32 16, %s20
      %v336 = vld [vmem:[%s328] sm:$0xff]
      %v337 = vld [vmem:[%s328 + $0x8] sm:$0xff]
      %v338 = vld [vmem:[%s328 + $0x10] sm:$0xff]
      %v339 = vld [vmem:[%s328 + $0x18] sm:$0xff]
      %v340 = vld [vmem:[%s328 + $0x20] sm:$0xff]
      %v341 = vld [vmem:[%s328 + $0x28] sm:$0xff]
      %v342 = vld [vmem:[%s328 + $0x30] sm:$0xff]
      %v343 = vld [vmem:[%s328 + $0x38] sm:$0xff]
      %v344 = vld [vmem:[%s328 + $0x40] sm:$0xff]
      %v345 = vld [vmem:[%s328 + $0x48] sm:$0xff]
      %v346 = vld [vmem:[%s328 + $0x50] sm:$0xff]
      %v347 = vld [vmem:[%s328 + $0x58] sm:$0xff]
      %v348 = vld [vmem:[%s328 + $0x60] sm:$0xff]
      %v349 = vld [vmem:[%s328 + $0x68] sm:$0xff]
      %v350 = vld [vmem:[%s328 + $0x70] sm:$0xff]
      %v351 = vld [vmem:[%s328 + $0x78] sm:$0xff]
      %v352 = vld [vmem:[%s1] sm:$0xff]
      %v353 = vld [vmem:[%s1 + $0x8] sm:$0xff]
      %v354 = vld [vmem:[%s2] sm:$0x1]
      %v356 = vperm.slane %v354, 0
      %vm358 = vcmask 130048
      %v360 = vsel %vm358, %v336, 0
      %v363 = vsel %vm358, %v337, 0
      %v366 = vsel %vm358, %v338, 0
      %v369 = vsel %vm358, %v339, 0
      %v372 = vsel %vm358, %v340, 0
      %v375 = vsel %vm358, %v341, 0
      %v378 = vsel %vm358, %v342, 0
      %v381 = vsel %vm358, %v343, 0
      %v384 = vsel %vm358, %v344, 0
      %v387 = vsel %vm358, %v345, 0
      %v390 = vsel %vm358, %v346, 0
      %v393 = vsel %vm358, %v347, 0
      %v396 = vsel %vm358, %v348, 0
      %v399 = vsel %vm358, %v349, 0
      %v402 = vsel %vm358, %v350, 0
      %v405 = vsel %vm358, %v351, 0
      %407 = vmatpush.msra.mxu0 0.0
      %408 = vmatpush.msra.mxu0 0.0
      %409 = vmatpush.msra.mxu0 0.0
      %410 = vmatpush.msra.mxu0 0.0
      %411 = vmatpush.msra.mxu0 0.0
      %412 = vmatpush.msra.mxu0 0.0
      %413 = vmatpush.msra.mxu0 0.0
      %414 = vmatpush.msra.mxu0 0.0
      %415 = vmatpush.msra.mxu0 0.0
      %416 = vmatpush.msra.mxu0 0.0
      %417 = vmatpush.msra.mxu0 0.0
      %418 = vmatpush.msra.mxu0 0.0
      %419 = vmatpush.msra.mxu0 0.0
      %420 = vmatpush.msra.mxu0 0.0
      %421 = vmatpush.msra.mxu0 %v353
      %422 = vmatpush.msra.mxu0 %v352
      %423 = vmatmul.f32.gmra.mxu0 %v360
      %v424 = vpop.f32.mrf.mxu0
      %v425 = vadd.f32 %v356, %v424
      %426 = vmatmul.f32.gmra.mxu0 %v363
      %v427 = vpop.f32.mrf.mxu0
      %v428 = vadd.f32 %v356, %v427
      %429 = vmatmul.f32.gmra.mxu0 %v366
      %v430 = vpop.f32.mrf.mxu0
      %v431 = vadd.f32 %v356, %v430
      %432 = vmatmul.f32.gmra.mxu0 %v369
      %v433 = vpop.f32.mrf.mxu0
      %v434 = vadd.f32 %v356, %v433
      %435 = vmatmul.f32.gmra.mxu0 %v372
      %v436 = vpop.f32.mrf.mxu0
      %v437 = vadd.f32 %v356, %v436
      %438 = vmatmul.f32.gmra.mxu0 %v375
      %v439 = vpop.f32.mrf.mxu0
      %v440 = vadd.f32 %v356, %v439
      %441 = vmatmul.f32.gmra.mxu0 %v378
      %v442 = vpop.f32.mrf.mxu0
      %v443 = vadd.f32 %v356, %v442
      %444 = vmatmul.f32.gmra.mxu0 %v381
      %v445 = vpop.f32.mrf.mxu0
      %v446 = vadd.f32 %v356, %v445
      %447 = vmatmul.f32.gmra.mxu0 %v384
      %v448 = vpop.f32.mrf.mxu0
      %v449 = vadd.f32 %v356, %v448
      %450 = vmatmul.f32.gmra.mxu0 %v387
      %v451 = vpop.f32.mrf.mxu0
      %v452 = vadd.f32 %v356, %v451
      %453 = vmatmul.f32.gmra.mxu0 %v390
      %v454 = vpop.f32.mrf.mxu0
      %v455 = vadd.f32 %v356, %v454
      %456 = vmatmul.f32.gmra.mxu0 %v393
      %v457 = vpop.f32.mrf.mxu0
      %v458 = vadd.f32 %v356, %v457
      %459 = vmatmul.f32.gmra.mxu0 %v396
      %v460 = vpop.f32.mrf.mxu0
      %v461 = vadd.f32 %v356, %v460
      %462 = vmatmul.f32.gmra.mxu0 %v399
      %v463 = vpop.f32.mrf.mxu0
      %v464 = vadd.f32 %v356, %v463
      %465 = vmatmul.f32.gmra.mxu0 %v402
      %v466 = vpop.f32.mrf.mxu0
      %v467 = vadd.f32 %v356, %v466
      %468 = vmatmul.f32.gmra.mxu0 %v405
      %v469 = vpop.f32.mrf.mxu0
      %v470 = vadd.f32 %v356, %v469
      %471 = vdwg.mxu0
      %v472 = vxor.u32 %v425, 2147483648
      %v473 = vxor.u32 %v428, 2147483648
      %v474 = vxor.u32 %v431, 2147483648
      %v475 = vxor.u32 %v434, 2147483648
      %v476 = vxor.u32 %v437, 2147483648
      %v477 = vxor.u32 %v440, 2147483648
      %v478 = vxor.u32 %v443, 2147483648
      %v479 = vxor.u32 %v446, 2147483648
      %v480 = vxor.u32 %v449, 2147483648
      %v481 = vxor.u32 %v452, 2147483648
      %v482 = vxor.u32 %v455, 2147483648
      %v483 = vxor.u32 %v458, 2147483648
      %v484 = vxor.u32 %v461, 2147483648
      %v485 = vxor.u32 %v464, 2147483648
      %v486 = vxor.u32 %v467, 2147483648
      %v487 = vxor.u32 %v470, 2147483648
      %v488 = vmul.f32 %v472, 1.442695
      %v489 = vpow.pop %v488
      %v490 = vmul.f32 %v473, 1.442695
      %v491 = vpow.pop %v490
      %v492 = vmul.f32 %v474, 1.442695
      %v493 = vpow.pop %v492
      %v494 = vmul.f32 %v475, 1.442695
      %v495 = vpow.pop %v494
      %v496 = vmul.f32 %v476, 1.442695
      %v497 = vpow.pop %v496
      %v498 = vmul.f32 %v477, 1.442695
      %v499 = vpow.pop %v498
      %v500 = vmul.f32 %v478, 1.442695
      %v501 = vpow.pop %v500
      %v502 = vmul.f32 %v479, 1.442695
      %v503 = vpow.pop %v502
      %v504 = vmul.f32 %v480, 1.442695
      %v505 = vpow.pop %v504
      %v506 = vmul.f32 %v481, 1.442695
      %v507 = vpow.pop %v506
      %v508 = vmul.f32 %v482, 1.442695
      %v509 = vpow.pop %v508
      %v510 = vmul.f32 %v483, 1.442695
      %v511 = vpow.pop %v510
      %v512 = vmul.f32 %v484, 1.442695
      %v513 = vpow.pop %v512
      %v514 = vmul.f32 %v485, 1.442695
      %v515 = vpow.pop %v514
      %v516 = vmul.f32 %v486, 1.442695
      %v517 = vpow.pop %v516
      %v518 = vmul.f32 %v487, 1.442695
      %v519 = vpow.pop %v518
      %v520 = vadd.f32 %v489, 1.0
      %v521 = vadd.f32 %v491, 1.0
      %v522 = vadd.f32 %v493, 1.0
      %v523 = vadd.f32 %v495, 1.0
      %v524 = vadd.f32 %v497, 1.0
      %v525 = vadd.f32 %v499, 1.0
      %v526 = vadd.f32 %v501, 1.0
      %v527 = vadd.f32 %v503, 1.0
      %v528 = vadd.f32 %v505, 1.0
      %v529 = vadd.f32 %v507, 1.0
      %v530 = vadd.f32 %v509, 1.0
      %v531 = vadd.f32 %v511, 1.0
      %v532 = vadd.f32 %v513, 1.0
      %v533 = vadd.f32 %v515, 1.0
      %v534 = vadd.f32 %v517, 1.0
      %v535 = vadd.f32 %v519, 1.0
      %v536 = vrcp.pop %v520
      %v537 = vmul.f32 %v520, %v536
      %v538 = vsub.f32 1.0, %v537
      %v539 = vmul.f32 %v536, %v538
      %v540 = vadd.f32 %v536, %v539
      %vm541 = vweird.f32 %v520
      %vm542 = vweird.f32 %v536
      %vm543 = vmor %vm541, %vm542
      %v544 = vsel %vm543, %v536, %v540
      %v545 = vand.u32 2147483647, %v520
      %vm546 = vcmp.eq.f32.partialorder %v545, 8.507059e+37
      %v547 = vand.u32 %v520, 2147483648
      %v548 = vor.u32 1.1754944e-38, %v547
      %v549 = vsel %vm546, %v548, %v544
      %v550 = vmul.f32 1.0, %v549
      %v551 = vrcp.pop %v521
      %v552 = vmul.f32 %v521, %v551
      %v553 = vsub.f32 1.0, %v552
      %v554 = vmul.f32 %v551, %v553
      %v555 = vadd.f32 %v551, %v554
      %vm556 = vweird.f32 %v521
      %vm557 = vweird.f32 %v551
      %vm558 = vmor %vm556, %vm557
      %v559 = vsel %vm558, %v551, %v555
      %v560 = vand.u32 2147483647, %v521
      %vm561 = vcmp.eq.f32.partialorder %v560, 8.507059e+37
      %v562 = vand.u32 %v521, 2147483648
      %v563 = vor.u32 1.1754944e-38, %v562
      %v564 = vsel %vm561, %v563, %v559
      %v565 = vmul.f32 1.0, %v564
      %v566 = vrcp.pop %v522
      %v567 = vmul.f32 %v522, %v566
      %v568 = vsub.f32 1.0, %v567
      %v569 = vmul.f32 %v566, %v568
      %v570 = vadd.f32 %v566, %v569
      %vm571 = vweird.f32 %v522
      %vm572 = vweird.f32 %v566
      %vm573 = vmor %vm571, %vm572
      %v574 = vsel %vm573, %v566, %v570
      %v575 = vand.u32 2147483647, %v522
      %vm576 = vcmp.eq.f32.partialorder %v575, 8.507059e+37
      %v577 = vand.u32 %v522, 2147483648
      %v578 = vor.u32 1.1754944e-38, %v577
      %v579 = vsel %vm576, %v578, %v574
      %v580 = vmul.f32 1.0, %v579
      %v581 = vrcp.pop %v523
      %v582 = vmul.f32 %v523, %v581
      %v583 = vsub.f32 1.0, %v582
      %v584 = vmul.f32 %v581, %v583
      %v585 = vadd.f32 %v581, %v584
      %vm586 = vweird.f32 %v523
      %vm587 = vweird.f32 %v581
      %vm588 = vmor %vm586, %vm587
      %v589 = vsel %vm588, %v581, %v585
      %v590 = vand.u32 2147483647, %v523
      %vm591 = vcmp.eq.f32.partialorder %v590, 8.507059e+37
      %v592 = vand.u32 %v523, 2147483648
      %v593 = vor.u32 1.1754944e-38, %v592
      %v594 = vsel %vm591, %v593, %v589
      %v595 = vmul.f32 1.0, %v594
      %v596 = vrcp.pop %v524
      %v597 = vmul.f32 %v524, %v596
      %v598 = vsub.f32 1.0, %v597
      %v599 = vmul.f32 %v596, %v598
      %v600 = vadd.f32 %v596, %v599
      %vm601 = vweird.f32 %v524
      %vm602 = vweird.f32 %v596
      %vm603 = vmor %vm601, %vm602
      %v604 = vsel %vm603, %v596, %v600
      %v605 = vand.u32 2147483647, %v524
      %vm606 = vcmp.eq.f32.partialorder %v605, 8.507059e+37
      %v607 = vand.u32 %v524, 2147483648
      %v608 = vor.u32 1.1754944e-38, %v607
      %v609 = vsel %vm606, %v608, %v604
      %v610 = vmul.f32 1.0, %v609
      %v611 = vrcp.pop %v525
      %v612 = vmul.f32 %v525, %v611
      %v613 = vsub.f32 1.0, %v612
      %v614 = vmul.f32 %v611, %v613
      %v615 = vadd.f32 %v611, %v614
      %vm616 = vweird.f32 %v525
      %vm617 = vweird.f32 %v611
      %vm618 = vmor %vm616, %vm617
      %v619 = vsel %vm618, %v611, %v615
      %v620 = vand.u32 2147483647, %v525
      %vm621 = vcmp.eq.f32.partialorder %v620, 8.507059e+37
      %v622 = vand.u32 %v525, 2147483648
      %v623 = vor.u32 1.1754944e-38, %v622
      %v624 = vsel %vm621, %v623, %v619
      %v625 = vmul.f32 1.0, %v624
      %v626 = vrcp.pop %v526
      %v627 = vmul.f32 %v526, %v626
      %v628 = vsub.f32 1.0, %v627
      %v629 = vmul.f32 %v626, %v628
      %v630 = vadd.f32 %v626, %v629
      %vm631 = vweird.f32 %v526
      %vm632 = vweird.f32 %v626
      %vm633 = vmor %vm631, %vm632
      %v634 = vsel %vm633, %v626, %v630
      %v635 = vand.u32 2147483647, %v526
      %vm636 = vcmp.eq.f32.partialorder %v635, 8.507059e+37
      %v637 = vand.u32 %v526, 2147483648
      %v638 = vor.u32 1.1754944e-38, %v637
      %v639 = vsel %vm636, %v638, %v634
      %v640 = vmul.f32 1.0, %v639
      %v641 = vrcp.pop %v527
      %v642 = vmul.f32 %v527, %v641
      %v643 = vsub.f32 1.0, %v642
      %v644 = vmul.f32 %v641, %v643
      %v645 = vadd.f32 %v641, %v644
      %vm646 = vweird.f32 %v527
      %vm647 = vweird.f32 %v641
      %vm648 = vmor %vm646, %vm647
      %v649 = vsel %vm648, %v641, %v645
      %v650 = vand.u32 2147483647, %v527
      %vm651 = vcmp.eq.f32.partialorder %v650, 8.507059e+37
      %v652 = vand.u32 %v527, 2147483648
      %v653 = vor.u32 1.1754944e-38, %v652
      %v654 = vsel %vm651, %v653, %v649
      %v655 = vmul.f32 1.0, %v654
      %v656 = vrcp.pop %v528
      %v657 = vmul.f32 %v528, %v656
      %v658 = vsub.f32 1.0, %v657
      %v659 = vmul.f32 %v656, %v658
      %v660 = vadd.f32 %v656, %v659
      %vm661 = vweird.f32 %v528
      %vm662 = vweird.f32 %v656
      %vm663 = vmor %vm661, %vm662
      %v664 = vsel %vm663, %v656, %v660
      %v665 = vand.u32 2147483647, %v528
      %vm666 = vcmp.eq.f32.partialorder %v665, 8.507059e+37
      %v667 = vand.u32 %v528, 2147483648
      %v668 = vor.u32 1.1754944e-38, %v667
      %v669 = vsel %vm666, %v668, %v664
      %v670 = vmul.f32 1.0, %v669
      %v671 = vrcp.pop %v529
      %v672 = vmul.f32 %v529, %v671
      %v673 = vsub.f32 1.0, %v672
      %v674 = vmul.f32 %v671, %v673
      %v675 = vadd.f32 %v671, %v674
      %vm676 = vweird.f32 %v529
      %vm677 = vweird.f32 %v671
      %vm678 = vmor %vm676, %vm677
      %v679 = vsel %vm678, %v671, %v675
      %v680 = vand.u32 2147483647, %v529
      %vm681 = vcmp.eq.f32.partialorder %v680, 8.507059e+37
      %v682 = vand.u32 %v529, 2147483648
      %v683 = vor.u32 1.1754944e-38, %v682
      %v684 = vsel %vm681, %v683, %v679
      %v685 = vmul.f32 1.0, %v684
      %v686 = vrcp.pop %v530
      %v687 = vmul.f32 %v530, %v686
      %v688 = vsub.f32 1.0, %v687
      %v689 = vmul.f32 %v686, %v688
      %v690 = vadd.f32 %v686, %v689
      %vm691 = vweird.f32 %v530
      %vm692 = vweird.f32 %v686
      %vm693 = vmor %vm691, %vm692
      %v694 = vsel %vm693, %v686, %v690
      %v695 = vand.u32 2147483647, %v530
      %vm696 = vcmp.eq.f32.partialorder %v695, 8.507059e+37
      %v697 = vand.u32 %v530, 2147483648
      %v698 = vor.u32 1.1754944e-38, %v697
      %v699 = vsel %vm696, %v698, %v694
      %v700 = vmul.f32 1.0, %v699
      %v701 = vrcp.pop %v531
      %v702 = vmul.f32 %v531, %v701
      %v703 = vsub.f32 1.0, %v702
      %v704 = vmul.f32 %v701, %v703
      %v705 = vadd.f32 %v701, %v704
      %vm706 = vweird.f32 %v531
      %vm707 = vweird.f32 %v701
      %vm708 = vmor %vm706, %vm707
      %v709 = vsel %vm708, %v701, %v705
      %v710 = vand.u32 2147483647, %v531
      %vm711 = vcmp.eq.f32.partialorder %v710, 8.507059e+37
      %v712 = vand.u32 %v531, 2147483648
      %v713 = vor.u32 1.1754944e-38, %v712
      %v714 = vsel %vm711, %v713, %v709
      %v715 = vmul.f32 1.0, %v714
      %v716 = vrcp.pop %v532
      %v717 = vmul.f32 %v532, %v716
      %v718 = vsub.f32 1.0, %v717
      %v719 = vmul.f32 %v716, %v718
      %v720 = vadd.f32 %v716, %v719
      %vm721 = vweird.f32 %v532
      %vm722 = vweird.f32 %v716
      %vm723 = vmor %vm721, %vm722
      %v724 = vsel %vm723, %v716, %v720
      %v725 = vand.u32 2147483647, %v532
      %vm726 = vcmp.eq.f32.partialorder %v725, 8.507059e+37
      %v727 = vand.u32 %v532, 2147483648
      %v728 = vor.u32 1.1754944e-38, %v727
      %v729 = vsel %vm726, %v728, %v724
      %v730 = vmul.f32 1.0, %v729
      %v731 = vrcp.pop %v533
      %v732 = vmul.f32 %v533, %v731
      %v733 = vsub.f32 1.0, %v732
      %v734 = vmul.f32 %v731, %v733
      %v735 = vadd.f32 %v731, %v734
      %vm736 = vweird.f32 %v533
      %vm737 = vweird.f32 %v731
      %vm738 = vmor %vm736, %vm737
      %v739 = vsel %vm738, %v731, %v735
      %v740 = vand.u32 2147483647, %v533
      %vm741 = vcmp.eq.f32.partialorder %v740, 8.507059e+37
      %v742 = vand.u32 %v533, 2147483648
      %v743 = vor.u32 1.1754944e-38, %v742
      %v744 = vsel %vm741, %v743, %v739
      %v745 = vmul.f32 1.0, %v744
      %v746 = vrcp.pop %v534
      %v747 = vmul.f32 %v534, %v746
      %v748 = vsub.f32 1.0, %v747
      %v749 = vmul.f32 %v746, %v748
      %v750 = vadd.f32 %v746, %v749
      %vm751 = vweird.f32 %v534
      %vm752 = vweird.f32 %v746
      %vm753 = vmor %vm751, %vm752
      %v754 = vsel %vm753, %v746, %v750
      %v755 = vand.u32 2147483647, %v534
      %vm756 = vcmp.eq.f32.partialorder %v755, 8.507059e+37
      %v757 = vand.u32 %v534, 2147483648
      %v758 = vor.u32 1.1754944e-38, %v757
      %v759 = vsel %vm756, %v758, %v754
      %v760 = vmul.f32 1.0, %v759
      %v761 = vrcp.pop %v535
      %v762 = vmul.f32 %v535, %v761
      %v763 = vsub.f32 1.0, %v762
      %v764 = vmul.f32 %v761, %v763
      %v765 = vadd.f32 %v761, %v764
      %vm766 = vweird.f32 %v535
      %vm767 = vweird.f32 %v761
      %vm768 = vmor %vm766, %vm767
      %v769 = vsel %vm768, %v761, %v765
      %v770 = vand.u32 2147483647, %v535
      %vm771 = vcmp.eq.f32.partialorder %v770, 8.507059e+37
      %v772 = vand.u32 %v535, 2147483648
      %v773 = vor.u32 1.1754944e-38, %v772
      %v774 = vsel %vm771, %v773, %v769
      %v775 = vmul.f32 1.0, %v774
      %v776 = vld [vmem:[%s3] sm:$0xff]
      %v777 = vld [vmem:[%s3 + $0x8] sm:$0xff]
      %v778 = vld [vmem:[%s3 + $0x10] sm:$0xff]
      %v779 = vld [vmem:[%s3 + $0x18] sm:$0xff]
      %v780 = vld [vmem:[%s4] sm:$0x1]
      %v782 = vperm.slane %v780, 0
      %vm784 = vcmask 261120
      %v786 = vsel %vm784, %v550, 0
      %v789 = vsel %vm784, %v565, 0
      %v792 = vsel %vm784, %v580, 0
      %v795 = vsel %vm784, %v595, 0
      %v798 = vsel %vm784, %v610, 0
      %v801 = vsel %vm784, %v625, 0
      %v804 = vsel %vm784, %v640, 0
      %v807 = vsel %vm784, %v655, 0
      %v810 = vsel %vm784, %v670, 0
      %v813 = vsel %vm784, %v685, 0
      %v816 = vsel %vm784, %v700, 0
      %v819 = vsel %vm784, %v715, 0
      %v822 = vsel %vm784, %v730, 0
      %v825 = vsel %vm784, %v745, 0
      %v828 = vsel %vm784, %v760, 0
      %v831 = vsel %vm784, %v775, 0
      %833 = vmatpush.msra.mxu0 0.0
      %834 = vmatpush.msra.mxu0 0.0
      %835 = vmatpush.msra.mxu0 0.0
      %836 = vmatpush.msra.mxu0 0.0
      %837 = vmatpush.msra.mxu0 0.0
      %838 = vmatpush.msra.mxu0 0.0
      %839 = vmatpush.msra.mxu0 0.0
      %840 = vmatpush.msra.mxu0 0.0
      %841 = vmatpush.msra.mxu0 0.0
      %842 = vmatpush.msra.mxu0 0.0
      %843 = vmatpush.msra.mxu0 0.0
      %844 = vmatpush.msra.mxu0 0.0
      %845 = vmatpush.msra.mxu0 %v779
      %846 = vmatpush.msra.mxu0 %v778
      %847 = vmatpush.msra.mxu0 %v777
      %848 = vmatpush.msra.mxu0 %v776
      %849 = vmatmul.f32.gmra.mxu0 %v786
      %v850 = vpop.f32.mrf.mxu0
      %v851 = vadd.f32 %v782, %v850
      %852 = vmatmul.f32.gmra.mxu0 %v789
      %v853 = vpop.f32.mrf.mxu0
      %v854 = vadd.f32 %v782, %v853
      %855 = vmatmul.f32.gmra.mxu0 %v792
      %v856 = vpop.f32.mrf.mxu0
      %v857 = vadd.f32 %v782, %v856
      %858 = vmatmul.f32.gmra.mxu0 %v795
      %v859 = vpop.f32.mrf.mxu0
      %v860 = vadd.f32 %v782, %v859
      %861 = vmatmul.f32.gmra.mxu0 %v798
      %v862 = vpop.f32.mrf.mxu0
      %v863 = vadd.f32 %v782, %v862
      %864 = vmatmul.f32.gmra.mxu0 %v801
      %v865 = vpop.f32.mrf.mxu0
      %v866 = vadd.f32 %v782, %v865
      %867 = vmatmul.f32.gmra.mxu0 %v804
      %v868 = vpop.f32.mrf.mxu0
      %v869 = vadd.f32 %v782, %v868
      %870 = vmatmul.f32.gmra.mxu0 %v807
      %v871 = vpop.f32.mrf.mxu0
      %v872 = vadd.f32 %v782, %v871
      %873 = vmatmul.f32.gmra.mxu0 %v810
      %v874 = vpop.f32.mrf.mxu0
      %v875 = vadd.f32 %v782, %v874
      %876 = vmatmul.f32.gmra.mxu0 %v813
      %v877 = vpop.f32.mrf.mxu0
      %v878 = vadd.f32 %v782, %v877
      %879 = vmatmul.f32.gmra.mxu0 %v816
      %v880 = vpop.f32.mrf.mxu0
      %v881 = vadd.f32 %v782, %v880
      %882 = vmatmul.f32.gmra.mxu0 %v819
      %v883 = vpop.f32.mrf.mxu0
      %v884 = vadd.f32 %v782, %v883
      %885 = vmatmul.f32.gmra.mxu0 %v822
      %v886 = vpop.f32.mrf.mxu0
      %v887 = vadd.f32 %v782, %v886
      %888 = vmatmul.f32.gmra.mxu0 %v825
      %v889 = vpop.f32.mrf.mxu0
      %v890 = vadd.f32 %v782, %v889
      %891 = vmatmul.f32.gmra.mxu0 %v828
      %v892 = vpop.f32.mrf.mxu0
      %v893 = vadd.f32 %v782, %v892
      %894 = vmatmul.f32.gmra.mxu0 %v831
      %v895 = vpop.f32.mrf.mxu0
      %v896 = vadd.f32 %v782, %v895
      %897 = vdwg.mxu0
      %v898 = vxor.u32 %v851, 2147483648
      %v899 = vxor.u32 %v854, 2147483648
      %v900 = vxor.u32 %v857, 2147483648
      %v901 = vxor.u32 %v860, 2147483648
      %v902 = vxor.u32 %v863, 2147483648
      %v903 = vxor.u32 %v866, 2147483648
      %v904 = vxor.u32 %v869, 2147483648
      %v905 = vxor.u32 %v872, 2147483648
      %v906 = vxor.u32 %v875, 2147483648
      %v907 = vxor.u32 %v878, 2147483648
      %v908 = vxor.u32 %v881, 2147483648
      %v909 = vxor.u32 %v884, 2147483648
      %v910 = vxor.u32 %v887, 2147483648
      %v911 = vxor.u32 %v890, 2147483648
      %v912 = vxor.u32 %v893, 2147483648
      %v913 = vxor.u32 %v896, 2147483648
      %v914 = vmul.f32 %v898, 1.442695
      %v915 = vpow.pop %v914
      %v916 = vmul.f32 %v899, 1.442695
      %v917 = vpow.pop %v916
      %v918 = vmul.f32 %v900, 1.442695
      %v919 = vpow.pop %v918
      %v920 = vmul.f32 %v901, 1.442695
      %v921 = vpow.pop %v920
      %v922 = vmul.f32 %v902, 1.442695
      %v923 = vpow.pop %v922
      %v924 = vmul.f32 %v903, 1.442695
      %v925 = vpow.pop %v924
      %v926 = vmul.f32 %v904, 1.442695
      %v927 = vpow.pop %v926
      %v928 = vmul.f32 %v905, 1.442695
      %v929 = vpow.pop %v928
      %v930 = vmul.f32 %v906, 1.442695
      %v931 = vpow.pop %v930
      %v932 = vmul.f32 %v907, 1.442695
      %v933 = vpow.pop %v932
      %v934 = vmul.f32 %v908, 1.442695
      %v935 = vpow.pop %v934
      %v936 = vmul.f32 %v909, 1.442695
      %v937 = vpow.pop %v936
      %v938 = vmul.f32 %v910, 1.442695
      %v939 = vpow.pop %v938
      %v940 = vmul.f32 %v911, 1.442695
      %v941 = vpow.pop %v940
      %v942 = vmul.f32 %v912, 1.442695
      %v943 = vpow.pop %v942
      %v944 = vmul.f32 %v913, 1.442695
      %v945 = vpow.pop %v944
      %v946 = vadd.f32 %v915, 1.0
      %v947 = vadd.f32 %v917, 1.0
      %v948 = vadd.f32 %v919, 1.0
      %v949 = vadd.f32 %v921, 1.0
      %v950 = vadd.f32 %v923, 1.0
      %v951 = vadd.f32 %v925, 1.0
      %v952 = vadd.f32 %v927, 1.0
      %v953 = vadd.f32 %v929, 1.0
      %v954 = vadd.f32 %v931, 1.0
      %v955 = vadd.f32 %v933, 1.0
      %v956 = vadd.f32 %v935, 1.0
      %v957 = vadd.f32 %v937, 1.0
      %v958 = vadd.f32 %v939, 1.0
      %v959 = vadd.f32 %v941, 1.0
      %v960 = vadd.f32 %v943, 1.0
      %v961 = vadd.f32 %v945, 1.0
      %v962 = vrcp.pop %v946
      %v963 = vmul.f32 %v946, %v962
      %v964 = vsub.f32 1.0, %v963
      %v965 = vmul.f32 %v962, %v964
      %v966 = vadd.f32 %v962, %v965
      %vm967 = vweird.f32 %v946
      %vm968 = vweird.f32 %v962
      %vm969 = vmor %vm967, %vm968
      %v970 = vsel %vm969, %v962, %v966
      %v971 = vand.u32 2147483647, %v946
      %vm972 = vcmp.eq.f32.partialorder %v971, 8.507059e+37
      %v973 = vand.u32 %v946, 2147483648
      %v974 = vor.u32 1.1754944e-38, %v973
      %v975 = vsel %vm972, %v974, %v970
      %v976 = vmul.f32 1.0, %v975
      %v977 = vrcp.pop %v947
      %v978 = vmul.f32 %v947, %v977
      %v979 = vsub.f32 1.0, %v978
      %v980 = vmul.f32 %v977, %v979
      %v981 = vadd.f32 %v977, %v980
      %vm982 = vweird.f32 %v947
      %vm983 = vweird.f32 %v977
      %vm984 = vmor %vm982, %vm983
      %v985 = vsel %vm984, %v977, %v981
      %v986 = vand.u32 2147483647, %v947
      %vm987 = vcmp.eq.f32.partialorder %v986, 8.507059e+37
      %v988 = vand.u32 %v947, 2147483648
      %v989 = vor.u32 1.1754944e-38, %v988
      %v990 = vsel %vm987, %v989, %v985
      %v991 = vmul.f32 1.0, %v990
      %v992 = vrcp.pop %v948
      %v993 = vmul.f32 %v948, %v992
      %v994 = vsub.f32 1.0, %v993
      %v995 = vmul.f32 %v992, %v994
      %v996 = vadd.f32 %v992, %v995
      %vm997 = vweird.f32 %v948
      %vm998 = vweird.f32 %v992
      %vm999 = vmor %vm997, %vm998
      %v1000 = vsel %vm999, %v992, %v996
      %v1001 = vand.u32 2147483647, %v948
      %vm1002 = vcmp.eq.f32.partialorder %v1001, 8.507059e+37
      %v1003 = vand.u32 %v948, 2147483648
      %v1004 = vor.u32 1.1754944e-38, %v1003
      %v1005 = vsel %vm1002, %v1004, %v1000
      %v1006 = vmul.f32 1.0, %v1005
      %v1007 = vrcp.pop %v949
      %v1008 = vmul.f32 %v949, %v1007
      %v1009 = vsub.f32 1.0, %v1008
      %v1010 = vmul.f32 %v1007, %v1009
      %v1011 = vadd.f32 %v1007, %v1010
      %vm1012 = vweird.f32 %v949
      %vm1013 = vweird.f32 %v1007
      %vm1014 = vmor %vm1012, %vm1013
      %v1015 = vsel %vm1014, %v1007, %v1011
      %v1016 = vand.u32 2147483647, %v949
      %vm1017 = vcmp.eq.f32.partialorder %v1016, 8.507059e+37
      %v1018 = vand.u32 %v949, 2147483648
      %v1019 = vor.u32 1.1754944e-38, %v1018
      %v1020 = vsel %vm1017, %v1019, %v1015
      %v1021 = vmul.f32 1.0, %v1020
      %v1022 = vrcp.pop %v950
      %v1023 = vmul.f32 %v950, %v1022
      %v1024 = vsub.f32 1.0, %v1023
      %v1025 = vmul.f32 %v1022, %v1024
      %v1026 = vadd.f32 %v1022, %v1025
      %vm1027 = vweird.f32 %v950
      %vm1028 = vweird.f32 %v1022
      %vm1029 = vmor %vm1027, %vm1028
      %v1030 = vsel %vm1029, %v1022, %v1026
      %v1031 = vand.u32 2147483647, %v950
      %vm1032 = vcmp.eq.f32.partialorder %v1031, 8.507059e+37
      %v1033 = vand.u32 %v950, 2147483648
      %v1034 = vor.u32 1.1754944e-38, %v1033
      %v1035 = vsel %vm1032, %v1034, %v1030
      %v1036 = vmul.f32 1.0, %v1035
      %v1037 = vrcp.pop %v951
      %v1038 = vmul.f32 %v951, %v1037
      %v1039 = vsub.f32 1.0, %v1038
      %v1040 = vmul.f32 %v1037, %v1039
      %v1041 = vadd.f32 %v1037, %v1040
      %vm1042 = vweird.f32 %v951
      %vm1043 = vweird.f32 %v1037
      %vm1044 = vmor %vm1042, %vm1043
      %v1045 = vsel %vm1044, %v1037, %v1041
      %v1046 = vand.u32 2147483647, %v951
      %vm1047 = vcmp.eq.f32.partialorder %v1046, 8.507059e+37
      %v1048 = vand.u32 %v951, 2147483648
      %v1049 = vor.u32 1.1754944e-38, %v1048
      %v1050 = vsel %vm1047, %v1049, %v1045
      %v1051 = vmul.f32 1.0, %v1050
      %v1052 = vrcp.pop %v952
      %v1053 = vmul.f32 %v952, %v1052
      %v1054 = vsub.f32 1.0, %v1053
      %v1055 = vmul.f32 %v1052, %v1054
      %v1056 = vadd.f32 %v1052, %v1055
      %vm1057 = vweird.f32 %v952
      %vm1058 = vweird.f32 %v1052
      %vm1059 = vmor %vm1057, %vm1058
      %v1060 = vsel %vm1059, %v1052, %v1056
      %v1061 = vand.u32 2147483647, %v952
      %vm1062 = vcmp.eq.f32.partialorder %v1061, 8.507059e+37
      %v1063 = vand.u32 %v952, 2147483648
      %v1064 = vor.u32 1.1754944e-38, %v1063
      %v1065 = vsel %vm1062, %v1064, %v1060
      %v1066 = vmul.f32 1.0, %v1065
      %v1067 = vrcp.pop %v953
      %v1068 = vmul.f32 %v953, %v1067
      %v1069 = vsub.f32 1.0, %v1068
      %v1070 = vmul.f32 %v1067, %v1069
      %v1071 = vadd.f32 %v1067, %v1070
      %vm1072 = vweird.f32 %v953
      %vm1073 = vweird.f32 %v1067
      %vm1074 = vmor %vm1072, %vm1073
      %v1075 = vsel %vm1074, %v1067, %v1071
      %v1076 = vand.u32 2147483647, %v953
      %vm1077 = vcmp.eq.f32.partialorder %v1076, 8.507059e+37
      %v1078 = vand.u32 %v953, 2147483648
      %v1079 = vor.u32 1.1754944e-38, %v1078
      %v1080 = vsel %vm1077, %v1079, %v1075
      %v1081 = vmul.f32 1.0, %v1080
      %v1082 = vrcp.pop %v954
      %v1083 = vmul.f32 %v954, %v1082
      %v1084 = vsub.f32 1.0, %v1083
      %v1085 = vmul.f32 %v1082, %v1084
      %v1086 = vadd.f32 %v1082, %v1085
      %vm1087 = vweird.f32 %v954
      %vm1088 = vweird.f32 %v1082
      %vm1089 = vmor %vm1087, %vm1088
      %v1090 = vsel %vm1089, %v1082, %v1086
      %v1091 = vand.u32 2147483647, %v954
      %vm1092 = vcmp.eq.f32.partialorder %v1091, 8.507059e+37
      %v1093 = vand.u32 %v954, 2147483648
      %v1094 = vor.u32 1.1754944e-38, %v1093
      %v1095 = vsel %vm1092, %v1094, %v1090
      %v1096 = vmul.f32 1.0, %v1095
      %v1097 = vrcp.pop %v955
      %v1098 = vmul.f32 %v955, %v1097
      %v1099 = vsub.f32 1.0, %v1098
      %v1100 = vmul.f32 %v1097, %v1099
      %v1101 = vadd.f32 %v1097, %v1100
      %vm1102 = vweird.f32 %v955
      %vm1103 = vweird.f32 %v1097
      %vm1104 = vmor %vm1102, %vm1103
      %v1105 = vsel %vm1104, %v1097, %v1101
      %v1106 = vand.u32 2147483647, %v955
      %vm1107 = vcmp.eq.f32.partialorder %v1106, 8.507059e+37
      %v1108 = vand.u32 %v955, 2147483648
      %v1109 = vor.u32 1.1754944e-38, %v1108
      %v1110 = vsel %vm1107, %v1109, %v1105
      %v1111 = vmul.f32 1.0, %v1110
      %v1112 = vrcp.pop %v956
      %v1113 = vmul.f32 %v956, %v1112
      %v1114 = vsub.f32 1.0, %v1113
      %v1115 = vmul.f32 %v1112, %v1114
      %v1116 = vadd.f32 %v1112, %v1115
      %vm1117 = vweird.f32 %v956
      %vm1118 = vweird.f32 %v1112
      %vm1119 = vmor %vm1117, %vm1118
      %v1120 = vsel %vm1119, %v1112, %v1116
      %v1121 = vand.u32 2147483647, %v956
      %vm1122 = vcmp.eq.f32.partialorder %v1121, 8.507059e+37
      %v1123 = vand.u32 %v956, 2147483648
      %v1124 = vor.u32 1.1754944e-38, %v1123
      %v1125 = vsel %vm1122, %v1124, %v1120
      %v1126 = vmul.f32 1.0, %v1125
      %v1127 = vrcp.pop %v957
      %v1128 = vmul.f32 %v957, %v1127
      %v1129 = vsub.f32 1.0, %v1128
      %v1130 = vmul.f32 %v1127, %v1129
      %v1131 = vadd.f32 %v1127, %v1130
      %vm1132 = vweird.f32 %v957
      %vm1133 = vweird.f32 %v1127
      %vm1134 = vmor %vm1132, %vm1133
      %v1135 = vsel %vm1134, %v1127, %v1131
      %v1136 = vand.u32 2147483647, %v957
      %vm1137 = vcmp.eq.f32.partialorder %v1136, 8.507059e+37
      %v1138 = vand.u32 %v957, 2147483648
      %v1139 = vor.u32 1.1754944e-38, %v1138
      %v1140 = vsel %vm1137, %v1139, %v1135
      %v1141 = vmul.f32 1.0, %v1140
      %v1142 = vrcp.pop %v958
      %v1143 = vmul.f32 %v958, %v1142
      %v1144 = vsub.f32 1.0, %v1143
      %v1145 = vmul.f32 %v1142, %v1144
      %v1146 = vadd.f32 %v1142, %v1145
      %vm1147 = vweird.f32 %v958
      %vm1148 = vweird.f32 %v1142
      %vm1149 = vmor %vm1147, %vm1148
      %v1150 = vsel %vm1149, %v1142, %v1146
      %v1151 = vand.u32 2147483647, %v958
      %vm1152 = vcmp.eq.f32.partialorder %v1151, 8.507059e+37
      %v1153 = vand.u32 %v958, 2147483648
      %v1154 = vor.u32 1.1754944e-38, %v1153
      %v1155 = vsel %vm1152, %v1154, %v1150
      %v1156 = vmul.f32 1.0, %v1155
      %v1157 = vrcp.pop %v959
      %v1158 = vmul.f32 %v959, %v1157
      %v1159 = vsub.f32 1.0, %v1158
      %v1160 = vmul.f32 %v1157, %v1159
      %v1161 = vadd.f32 %v1157, %v1160
      %vm1162 = vweird.f32 %v959
      %vm1163 = vweird.f32 %v1157
      %vm1164 = vmor %vm1162, %vm1163
      %v1165 = vsel %vm1164, %v1157, %v1161
      %v1166 = vand.u32 2147483647, %v959
      %vm1167 = vcmp.eq.f32.partialorder %v1166, 8.507059e+37
      %v1168 = vand.u32 %v959, 2147483648
      %v1169 = vor.u32 1.1754944e-38, %v1168
      %v1170 = vsel %vm1167, %v1169, %v1165
      %v1171 = vmul.f32 1.0, %v1170
      %v1172 = vrcp.pop %v960
      %v1173 = vmul.f32 %v960, %v1172
      %v1174 = vsub.f32 1.0, %v1173
      %v1175 = vmul.f32 %v1172, %v1174
      %v1176 = vadd.f32 %v1172, %v1175
      %vm1177 = vweird.f32 %v960
      %vm1178 = vweird.f32 %v1172
      %vm1179 = vmor %vm1177, %vm1178
      %v1180 = vsel %vm1179, %v1172, %v1176
      %v1181 = vand.u32 2147483647, %v960
      %vm1182 = vcmp.eq.f32.partialorder %v1181, 8.507059e+37
      %v1183 = vand.u32 %v960, 2147483648
      %v1184 = vor.u32 1.1754944e-38, %v1183
      %v1185 = vsel %vm1182, %v1184, %v1180
      %v1186 = vmul.f32 1.0, %v1185
      %v1187 = vrcp.pop %v961
      %v1188 = vmul.f32 %v961, %v1187
      %v1189 = vsub.f32 1.0, %v1188
      %v1190 = vmul.f32 %v1187, %v1189
      %v1191 = vadd.f32 %v1187, %v1190
      %vm1192 = vweird.f32 %v961
      %vm1193 = vweird.f32 %v1187
      %vm1194 = vmor %vm1192, %vm1193
      %v1195 = vsel %vm1194, %v1187, %v1191
      %v1196 = vand.u32 2147483647, %v961
      %vm1197 = vcmp.eq.f32.partialorder %v1196, 8.507059e+37
      %v1198 = vand.u32 %v961, 2147483648
      %v1199 = vor.u32 1.1754944e-38, %v1198
      %v1200 = vsel %vm1197, %v1199, %v1195
      %v1201 = vmul.f32 1.0, %v1200
      %v1202 = vld [vmem:[%s5] sm:$0xff]
      %v1203 = vld [vmem:[%s5 + $0x8] sm:$0xff]
      %v1204 = vld [vmem:[%s5 + $0x10] sm:$0xff]
      %v1205 = vld [vmem:[%s5 + $0x18] sm:$0xff]
      %v1206 = vld [vmem:[%s6] sm:$0x1]
      %v1208 = vperm.slane %v1206, 0
      %v1211 = vsel %vm784, %v976, 0
      %v1214 = vsel %vm784, %v991, 0
      %v1217 = vsel %vm784, %v1006, 0
      %v1220 = vsel %vm784, %v1021, 0
      %v1223 = vsel %vm784, %v1036, 0
      %v1226 = vsel %vm784, %v1051, 0
      %v1229 = vsel %vm784, %v1066, 0
      %v1232 = vsel %vm784, %v1081, 0
      %v1235 = vsel %vm784, %v1096, 0
      %v1238 = vsel %vm784, %v1111, 0
      %v1241 = vsel %vm784, %v1126, 0
      %v1244 = vsel %vm784, %v1141, 0
      %v1247 = vsel %vm784, %v1156, 0
      %v1250 = vsel %vm784, %v1171, 0
      %v1253 = vsel %vm784, %v1186, 0
      %v1256 = vsel %vm784, %v1201, 0
      %1258 = vmatpush.msra.mxu0 0.0
      %1259 = vmatpush.msra.mxu0 0.0
      %1260 = vmatpush.msra.mxu0 0.0
      %1261 = vmatpush.msra.mxu0 0.0
      %1262 = vmatpush.msra.mxu0 0.0
      %1263 = vmatpush.msra.mxu0 0.0
      %1264 = vmatpush.msra.mxu0 0.0
      %1265 = vmatpush.msra.mxu0 0.0
      %1266 = vmatpush.msra.mxu0 0.0
      %1267 = vmatpush.msra.mxu0 0.0
      %1268 = vmatpush.msra.mxu0 0.0
      %1269 = vmatpush.msra.mxu0 0.0
      %1270 = vmatpush.msra.mxu0 %v1205
      %1271 = vmatpush.msra.mxu0 %v1204
      %1272 = vmatpush.msra.mxu0 %v1203
      %1273 = vmatpush.msra.mxu0 %v1202
      %1274 = vmatmul.f32.gmra.mxu0 %v1211
      %v1275 = vpop.f32.mrf.mxu0
      %v1276 = vadd.f32 %v1208, %v1275
      %1277 = vmatmul.f32.gmra.mxu0 %v1214
      %v1278 = vpop.f32.mrf.mxu0
      %v1279 = vadd.f32 %v1208, %v1278
      %1280 = vmatmul.f32.gmra.mxu0 %v1217
      %v1281 = vpop.f32.mrf.mxu0
      %v1282 = vadd.f32 %v1208, %v1281
      %1283 = vmatmul.f32.gmra.mxu0 %v1220
      %v1284 = vpop.f32.mrf.mxu0
      %v1285 = vadd.f32 %v1208, %v1284
      %1286 = vmatmul.f32.gmra.mxu0 %v1223
      %v1287 = vpop.f32.mrf.mxu0
      %v1288 = vadd.f32 %v1208, %v1287
      %1289 = vmatmul.f32.gmra.mxu0 %v1226
      %v1290 = vpop.f32.mrf.mxu0
      %v1291 = vadd.f32 %v1208, %v1290
      %1292 = vmatmul.f32.gmra.mxu0 %v1229
      %v1293 = vpop.f32.mrf.mxu0
      %v1294 = vadd.f32 %v1208, %v1293
      %1295 = vmatmul.f32.gmra.mxu0 %v1232
      %v1296 = vpop.f32.mrf.mxu0
      %v1297 = vadd.f32 %v1208, %v1296
      %1298 = vmatmul.f32.gmra.mxu0 %v1235
      %v1299 = vpop.f32.mrf.mxu0
      %v1300 = vadd.f32 %v1208, %v1299
      %1301 = vmatmul.f32.gmra.mxu0 %v1238
      %v1302 = vpop.f32.mrf.mxu0
      %v1303 = vadd.f32 %v1208, %v1302
      %1304 = vmatmul.f32.gmra.mxu0 %v1241
      %v1305 = vpop.f32.mrf.mxu0
      %v1306 = vadd.f32 %v1208, %v1305
      %1307 = vmatmul.f32.gmra.mxu0 %v1244
      %v1308 = vpop.f32.mrf.mxu0
      %v1309 = vadd.f32 %v1208, %v1308
      %1310 = vmatmul.f32.gmra.mxu0 %v1247
      %v1311 = vpop.f32.mrf.mxu0
      %v1312 = vadd.f32 %v1208, %v1311
      %1313 = vmatmul.f32.gmra.mxu0 %v1250
      %v1314 = vpop.f32.mrf.mxu0
      %v1315 = vadd.f32 %v1208, %v1314
      %1316 = vmatmul.f32.gmra.mxu0 %v1253
      %v1317 = vpop.f32.mrf.mxu0
      %v1318 = vadd.f32 %v1208, %v1317
      %1319 = vmatmul.f32.gmra.mxu0 %v1256
      %v1320 = vpop.f32.mrf.mxu0
      %v1321 = vadd.f32 %v1208, %v1320
      %1322 = vdwg.mxu0
      %v1323 = vadd.f32 %v1276, %v550
      %v1324 = vadd.f32 %v1279, %v565
      %v1325 = vadd.f32 %v1282, %v580
      %v1326 = vadd.f32 %v1285, %v595
      %v1327 = vadd.f32 %v1288, %v610
      %v1328 = vadd.f32 %v1291, %v625
      %v1329 = vadd.f32 %v1294, %v640
      %v1330 = vadd.f32 %v1297, %v655
      %v1331 = vadd.f32 %v1300, %v670
      %v1332 = vadd.f32 %v1303, %v685
      %v1333 = vadd.f32 %v1306, %v700
      %v1334 = vadd.f32 %v1309, %v715
      %v1335 = vadd.f32 %v1312, %v730
      %v1336 = vadd.f32 %v1315, %v745
      %v1337 = vadd.f32 %v1318, %v760
      %v1338 = vadd.f32 %v1321, %v775
      %v1339 = vxor.u32 %v1323, 2147483648
      %v1340 = vxor.u32 %v1324, 2147483648
      %v1341 = vxor.u32 %v1325, 2147483648
      %v1342 = vxor.u32 %v1326, 2147483648
      %v1343 = vxor.u32 %v1327, 2147483648
      %v1344 = vxor.u32 %v1328, 2147483648
      %v1345 = vxor.u32 %v1329, 2147483648
      %v1346 = vxor.u32 %v1330, 2147483648
      %v1347 = vxor.u32 %v1331, 2147483648
      %v1348 = vxor.u32 %v1332, 2147483648
      %v1349 = vxor.u32 %v1333, 2147483648
      %v1350 = vxor.u32 %v1334, 2147483648
      %v1351 = vxor.u32 %v1335, 2147483648
      %v1352 = vxor.u32 %v1336, 2147483648
      %v1353 = vxor.u32 %v1337, 2147483648
      %v1354 = vxor.u32 %v1338, 2147483648
      %v1355 = vmul.f32 %v1339, 1.442695
      %v1356 = vpow.pop %v1355
      %v1357 = vmul.f32 %v1340, 1.442695
      %v1358 = vpow.pop %v1357
      %v1359 = vmul.f32 %v1341, 1.442695
      %v1360 = vpow.pop %v1359
      %v1361 = vmul.f32 %v1342, 1.442695
      %v1362 = vpow.pop %v1361
      %v1363 = vmul.f32 %v1343, 1.442695
      %v1364 = vpow.pop %v1363
      %v1365 = vmul.f32 %v1344, 1.442695
      %v1366 = vpow.pop %v1365
      %v1367 = vmul.f32 %v1345, 1.442695
      %v1368 = vpow.pop %v1367
      %v1369 = vmul.f32 %v1346, 1.442695
      %v1370 = vpow.pop %v1369
      %v1371 = vmul.f32 %v1347, 1.442695
      %v1372 = vpow.pop %v1371
      %v1373 = vmul.f32 %v1348, 1.442695
      %v1374 = vpow.pop %v1373
      %v1375 = vmul.f32 %v1349, 1.442695
      %v1376 = vpow.pop %v1375
      %v1377 = vmul.f32 %v1350, 1.442695
      %v1378 = vpow.pop %v1377
      %v1379 = vmul.f32 %v1351, 1.442695
      %v1380 = vpow.pop %v1379
      %v1381 = vmul.f32 %v1352, 1.442695
      %v1382 = vpow.pop %v1381
      %v1383 = vmul.f32 %v1353, 1.442695
      %v1384 = vpow.pop %v1383
      %v1385 = vmul.f32 %v1354, 1.442695
      %v1386 = vpow.pop %v1385
      %v1387 = vadd.f32 %v1356, 1.0
      %v1388 = vadd.f32 %v1358, 1.0
      %v1389 = vadd.f32 %v1360, 1.0
      %v1390 = vadd.f32 %v1362, 1.0
      %v1391 = vadd.f32 %v1364, 1.0
      %v1392 = vadd.f32 %v1366, 1.0
      %v1393 = vadd.f32 %v1368, 1.0
      %v1394 = vadd.f32 %v1370, 1.0
      %v1395 = vadd.f32 %v1372, 1.0
      %v1396 = vadd.f32 %v1374, 1.0
      %v1397 = vadd.f32 %v1376, 1.0
      %v1398 = vadd.f32 %v1378, 1.0
      %v1399 = vadd.f32 %v1380, 1.0
      %v1400 = vadd.f32 %v1382, 1.0
      %v1401 = vadd.f32 %v1384, 1.0
      %v1402 = vadd.f32 %v1386, 1.0
      %v1403 = vrcp.pop %v1387
      %v1404 = vmul.f32 %v1387, %v1403
      %v1405 = vsub.f32 1.0, %v1404
      %v1406 = vmul.f32 %v1403, %v1405
      %v1407 = vadd.f32 %v1403, %v1406
      %vm1408 = vweird.f32 %v1387
      %vm1409 = vweird.f32 %v1403
      %vm1410 = vmor %vm1408, %vm1409
      %v1411 = vsel %vm1410, %v1403, %v1407
      %v1412 = vand.u32 2147483647, %v1387
      %vm1413 = vcmp.eq.f32.partialorder %v1412, 8.507059e+37
      %v1414 = vand.u32 %v1387, 2147483648
      %v1415 = vor.u32 1.1754944e-38, %v1414
      %v1416 = vsel %vm1413, %v1415, %v1411
      %v1417 = vmul.f32 1.0, %v1416
      %v1418 = vrcp.pop %v1388
      %v1419 = vmul.f32 %v1388, %v1418
      %v1420 = vsub.f32 1.0, %v1419
      %v1421 = vmul.f32 %v1418, %v1420
      %v1422 = vadd.f32 %v1418, %v1421
      %vm1423 = vweird.f32 %v1388
      %vm1424 = vweird.f32 %v1418
      %vm1425 = vmor %vm1423, %vm1424
      %v1426 = vsel %vm1425, %v1418, %v1422
      %v1427 = vand.u32 2147483647, %v1388
      %vm1428 = vcmp.eq.f32.partialorder %v1427, 8.507059e+37
      %v1429 = vand.u32 %v1388, 2147483648
      %v1430 = vor.u32 1.1754944e-38, %v1429
      %v1431 = vsel %vm1428, %v1430, %v1426
      %v1432 = vmul.f32 1.0, %v1431
      %v1433 = vrcp.pop %v1389
      %v1434 = vmul.f32 %v1389, %v1433
      %v1435 = vsub.f32 1.0, %v1434
      %v1436 = vmul.f32 %v1433, %v1435
      %v1437 = vadd.f32 %v1433, %v1436
      %vm1438 = vweird.f32 %v1389
      %vm1439 = vweird.f32 %v1433
      %vm1440 = vmor %vm1438, %vm1439
      %v1441 = vsel %vm1440, %v1433, %v1437
      %v1442 = vand.u32 2147483647, %v1389
      %vm1443 = vcmp.eq.f32.partialorder %v1442, 8.507059e+37
      %v1444 = vand.u32 %v1389, 2147483648
      %v1445 = vor.u32 1.1754944e-38, %v1444
      %v1446 = vsel %vm1443, %v1445, %v1441
      %v1447 = vmul.f32 1.0, %v1446
      %v1448 = vrcp.pop %v1390
      %v1449 = vmul.f32 %v1390, %v1448
      %v1450 = vsub.f32 1.0, %v1449
      %v1451 = vmul.f32 %v1448, %v1450
      %v1452 = vadd.f32 %v1448, %v1451
      %vm1453 = vweird.f32 %v1390
      %vm1454 = vweird.f32 %v1448
      %vm1455 = vmor %vm1453, %vm1454
      %v1456 = vsel %vm1455, %v1448, %v1452
      %v1457 = vand.u32 2147483647, %v1390
      %vm1458 = vcmp.eq.f32.partialorder %v1457, 8.507059e+37
      %v1459 = vand.u32 %v1390, 2147483648
      %v1460 = vor.u32 1.1754944e-38, %v1459
      %v1461 = vsel %vm1458, %v1460, %v1456
      %v1462 = vmul.f32 1.0, %v1461
      %v1463 = vrcp.pop %v1391
      %v1464 = vmul.f32 %v1391, %v1463
      %v1465 = vsub.f32 1.0, %v1464
      %v1466 = vmul.f32 %v1463, %v1465
      %v1467 = vadd.f32 %v1463, %v1466
      %vm1468 = vweird.f32 %v1391
      %vm1469 = vweird.f32 %v1463
      %vm1470 = vmor %vm1468, %vm1469
      %v1471 = vsel %vm1470, %v1463, %v1467
      %v1472 = vand.u32 2147483647, %v1391
      %vm1473 = vcmp.eq.f32.partialorder %v1472, 8.507059e+37
      %v1474 = vand.u32 %v1391, 2147483648
      %v1475 = vor.u32 1.1754944e-38, %v1474
      %v1476 = vsel %vm1473, %v1475, %v1471
      %v1477 = vmul.f32 1.0, %v1476
      %v1478 = vrcp.pop %v1392
      %v1479 = vmul.f32 %v1392, %v1478
      %v1480 = vsub.f32 1.0, %v1479
      %v1481 = vmul.f32 %v1478, %v1480
      %v1482 = vadd.f32 %v1478, %v1481
      %vm1483 = vweird.f32 %v1392
      %vm1484 = vweird.f32 %v1478
      %vm1485 = vmor %vm1483, %vm1484
      %v1486 = vsel %vm1485, %v1478, %v1482
      %v1487 = vand.u32 2147483647, %v1392
      %vm1488 = vcmp.eq.f32.partialorder %v1487, 8.507059e+37
      %v1489 = vand.u32 %v1392, 2147483648
      %v1490 = vor.u32 1.1754944e-38, %v1489
      %v1491 = vsel %vm1488, %v1490, %v1486
      %v1492 = vmul.f32 1.0, %v1491
      %v1493 = vrcp.pop %v1393
      %v1494 = vmul.f32 %v1393, %v1493
      %v1495 = vsub.f32 1.0, %v1494
      %v1496 = vmul.f32 %v1493, %v1495
      %v1497 = vadd.f32 %v1493, %v1496
      %vm1498 = vweird.f32 %v1393
      %vm1499 = vweird.f32 %v1493
      %vm1500 = vmor %vm1498, %vm1499
      %v1501 = vsel %vm1500, %v1493, %v1497
      %v1502 = vand.u32 2147483647, %v1393
      %vm1503 = vcmp.eq.f32.partialorder %v1502, 8.507059e+37
      %v1504 = vand.u32 %v1393, 2147483648
      %v1505 = vor.u32 1.1754944e-38, %v1504
      %v1506 = vsel %vm1503, %v1505, %v1501
      %v1507 = vmul.f32 1.0, %v1506
      %v1508 = vrcp.pop %v1394
      %v1509 = vmul.f32 %v1394, %v1508
      %v1510 = vsub.f32 1.0, %v1509
      %v1511 = vmul.f32 %v1508, %v1510
      %v1512 = vadd.f32 %v1508, %v1511
      %vm1513 = vweird.f32 %v1394
      %vm1514 = vweird.f32 %v1508
      %vm1515 = vmor %vm1513, %vm1514
      %v1516 = vsel %vm1515, %v1508, %v1512
      %v1517 = vand.u32 2147483647, %v1394
      %vm1518 = vcmp.eq.f32.partialorder %v1517, 8.507059e+37
      %v1519 = vand.u32 %v1394, 2147483648
      %v1520 = vor.u32 1.1754944e-38, %v1519
      %v1521 = vsel %vm1518, %v1520, %v1516
      %v1522 = vmul.f32 1.0, %v1521
      %v1523 = vrcp.pop %v1395
      %v1524 = vmul.f32 %v1395, %v1523
      %v1525 = vsub.f32 1.0, %v1524
      %v1526 = vmul.f32 %v1523, %v1525
      %v1527 = vadd.f32 %v1523, %v1526
      %vm1528 = vweird.f32 %v1395
      %vm1529 = vweird.f32 %v1523
      %vm1530 = vmor %vm1528, %vm1529
      %v1531 = vsel %vm1530, %v1523, %v1527
      %v1532 = vand.u32 2147483647, %v1395
      %vm1533 = vcmp.eq.f32.partialorder %v1532, 8.507059e+37
      %v1534 = vand.u32 %v1395, 2147483648
      %v1535 = vor.u32 1.1754944e-38, %v1534
      %v1536 = vsel %vm1533, %v1535, %v1531
      %v1537 = vmul.f32 1.0, %v1536
      %v1538 = vrcp.pop %v1396
      %v1539 = vmul.f32 %v1396, %v1538
      %v1540 = vsub.f32 1.0, %v1539
      %v1541 = vmul.f32 %v1538, %v1540
      %v1542 = vadd.f32 %v1538, %v1541
      %vm1543 = vweird.f32 %v1396
      %vm1544 = vweird.f32 %v1538
      %vm1545 = vmor %vm1543, %vm1544
      %v1546 = vsel %vm1545, %v1538, %v1542
      %v1547 = vand.u32 2147483647, %v1396
      %vm1548 = vcmp.eq.f32.partialorder %v1547, 8.507059e+37
      %v1549 = vand.u32 %v1396, 2147483648
      %v1550 = vor.u32 1.1754944e-38, %v1549
      %v1551 = vsel %vm1548, %v1550, %v1546
      %v1552 = vmul.f32 1.0, %v1551
      %v1553 = vrcp.pop %v1397
      %v1554 = vmul.f32 %v1397, %v1553
      %v1555 = vsub.f32 1.0, %v1554
      %v1556 = vmul.f32 %v1553, %v1555
      %v1557 = vadd.f32 %v1553, %v1556
      %vm1558 = vweird.f32 %v1397
      %vm1559 = vweird.f32 %v1553
      %vm1560 = vmor %vm1558, %vm1559
      %v1561 = vsel %vm1560, %v1553, %v1557
      %v1562 = vand.u32 2147483647, %v1397
      %vm1563 = vcmp.eq.f32.partialorder %v1562, 8.507059e+37
      %v1564 = vand.u32 %v1397, 2147483648
      %v1565 = vor.u32 1.1754944e-38, %v1564
      %v1566 = vsel %vm1563, %v1565, %v1561
      %v1567 = vmul.f32 1.0, %v1566
      %v1568 = vrcp.pop %v1398
      %v1569 = vmul.f32 %v1398, %v1568
      %v1570 = vsub.f32 1.0, %v1569
      %v1571 = vmul.f32 %v1568, %v1570
      %v1572 = vadd.f32 %v1568, %v1571
      %vm1573 = vweird.f32 %v1398
      %vm1574 = vweird.f32 %v1568
      %vm1575 = vmor %vm1573, %vm1574
      %v1576 = vsel %vm1575, %v1568, %v1572
      %v1577 = vand.u32 2147483647, %v1398
      %vm1578 = vcmp.eq.f32.partialorder %v1577, 8.507059e+37
      %v1579 = vand.u32 %v1398, 2147483648
      %v1580 = vor.u32 1.1754944e-38, %v1579
      %v1581 = vsel %vm1578, %v1580, %v1576
      %v1582 = vmul.f32 1.0, %v1581
      %v1583 = vrcp.pop %v1399
      %v1584 = vmul.f32 %v1399, %v1583
      %v1585 = vsub.f32 1.0, %v1584
      %v1586 = vmul.f32 %v1583, %v1585
      %v1587 = vadd.f32 %v1583, %v1586
      %vm1588 = vweird.f32 %v1399
      %vm1589 = vweird.f32 %v1583
      %vm1590 = vmor %vm1588, %vm1589
      %v1591 = vsel %vm1590, %v1583, %v1587
      %v1592 = vand.u32 2147483647, %v1399
      %vm1593 = vcmp.eq.f32.partialorder %v1592, 8.507059e+37
      %v1594 = vand.u32 %v1399, 2147483648
      %v1595 = vor.u32 1.1754944e-38, %v1594
      %v1596 = vsel %vm1593, %v1595, %v1591
      %v1597 = vmul.f32 1.0, %v1596
      %v1598 = vrcp.pop %v1400
      %v1599 = vmul.f32 %v1400, %v1598
      %v1600 = vsub.f32 1.0, %v1599
      %v1601 = vmul.f32 %v1598, %v1600
      %v1602 = vadd.f32 %v1598, %v1601
      %vm1603 = vweird.f32 %v1400
      %vm1604 = vweird.f32 %v1598
      %vm1605 = vmor %vm1603, %vm1604
      %v1606 = vsel %vm1605, %v1598, %v1602
      %v1607 = vand.u32 2147483647, %v1400
      %vm1608 = vcmp.eq.f32.partialorder %v1607, 8.507059e+37
      %v1609 = vand.u32 %v1400, 2147483648
      %v1610 = vor.u32 1.1754944e-38, %v1609
      %v1611 = vsel %vm1608, %v1610, %v1606
      %v1612 = vmul.f32 1.0, %v1611
      %v1613 = vrcp.pop %v1401
      %v1614 = vmul.f32 %v1401, %v1613
      %v1615 = vsub.f32 1.0, %v1614
      %v1616 = vmul.f32 %v1613, %v1615
      %v1617 = vadd.f32 %v1613, %v1616
      %vm1618 = vweird.f32 %v1401
      %vm1619 = vweird.f32 %v1613
      %vm1620 = vmor %vm1618, %vm1619
      %v1621 = vsel %vm1620, %v1613, %v1617
      %v1622 = vand.u32 2147483647, %v1401
      %vm1623 = vcmp.eq.f32.partialorder %v1622, 8.507059e+37
      %v1624 = vand.u32 %v1401, 2147483648
      %v1625 = vor.u32 1.1754944e-38, %v1624
      %v1626 = vsel %vm1623, %v1625, %v1621
      %v1627 = vmul.f32 1.0, %v1626
      %v1628 = vrcp.pop %v1402
      %v1629 = vmul.f32 %v1402, %v1628
      %v1630 = vsub.f32 1.0, %v1629
      %v1631 = vmul.f32 %v1628, %v1630
      %v1632 = vadd.f32 %v1628, %v1631
      %vm1633 = vweird.f32 %v1402
      %vm1634 = vweird.f32 %v1628
      %vm1635 = vmor %vm1633, %vm1634
      %v1636 = vsel %vm1635, %v1628, %v1632
      %v1637 = vand.u32 2147483647, %v1402
      %vm1638 = vcmp.eq.f32.partialorder %v1637, 8.507059e+37
      %v1639 = vand.u32 %v1402, 2147483648
      %v1640 = vor.u32 1.1754944e-38, %v1639
      %v1641 = vsel %vm1638, %v1640, %v1636
      %v1642 = vmul.f32 1.0, %v1641
      %v1643 = vld [vmem:[%s7] sm:$0xff]
      %v1644 = vld [vmem:[%s7 + $0x8] sm:$0xff]
      %v1645 = vld [vmem:[%s7 + $0x10] sm:$0xff]
      %v1646 = vld [vmem:[%s7 + $0x18] sm:$0xff]
      %v1647 = vld [vmem:[%s8] sm:$0x1]
      %v1649 = vperm.slane %v1647, 0
      %v1652 = vsel %vm784, %v1417, 0
      %v1655 = vsel %vm784, %v1432, 0
      %v1658 = vsel %vm784, %v1447, 0
      %v1661 = vsel %vm784, %v1462, 0
      %v1664 = vsel %vm784, %v1477, 0
      %v1667 = vsel %vm784, %v1492, 0
      %v1670 = vsel %vm784, %v1507, 0
      %v1673 = vsel %vm784, %v1522, 0
      %v1676 = vsel %vm784, %v1537, 0
      %v1679 = vsel %vm784, %v1552, 0
      %v1682 = vsel %vm784, %v1567, 0
      %v1685 = vsel %vm784, %v1582, 0
      %v1688 = vsel %vm784, %v1597, 0
      %v1691 = vsel %vm784, %v1612, 0
      %v1694 = vsel %vm784, %v1627, 0
      %v1697 = vsel %vm784, %v1642, 0
      %1699 = vmatpush.msra.mxu0 0.0
      %1700 = vmatpush.msra.mxu0 0.0
      %1701 = vmatpush.msra.mxu0 0.0
      %1702 = vmatpush.msra.mxu0 0.0
      %1703 = vmatpush.msra.mxu0 0.0
      %1704 = vmatpush.msra.mxu0 0.0
      %1705 = vmatpush.msra.mxu0 0.0
      %1706 = vmatpush.msra.mxu0 0.0
      %1707 = vmatpush.msra.mxu0 0.0
      %1708 = vmatpush.msra.mxu0 0.0
      %1709 = vmatpush.msra.mxu0 0.0
      %1710 = vmatpush.msra.mxu0 0.0
      %1711 = vmatpush.msra.mxu0 %v1646
      %1712 = vmatpush.msra.mxu0 %v1645
      %1713 = vmatpush.msra.mxu0 %v1644
      %1714 = vmatpush.msra.mxu0 %v1643
      %1715 = vmatmul.f32.gmra.mxu0 %v1652
      %v1716 = vpop.f32.mrf.mxu0
      %v1717 = vadd.f32 %v1649, %v1716
      %1718 = vmatmul.f32.gmra.mxu0 %v1655
      %v1719 = vpop.f32.mrf.mxu0
      %v1720 = vadd.f32 %v1649, %v1719
      %1721 = vmatmul.f32.gmra.mxu0 %v1658
      %v1722 = vpop.f32.mrf.mxu0
      %v1723 = vadd.f32 %v1649, %v1722
      %1724 = vmatmul.f32.gmra.mxu0 %v1661
      %v1725 = vpop.f32.mrf.mxu0
      %v1726 = vadd.f32 %v1649, %v1725
      %1727 = vmatmul.f32.gmra.mxu0 %v1664
      %v1728 = vpop.f32.mrf.mxu0
      %v1729 = vadd.f32 %v1649, %v1728
      %1730 = vmatmul.f32.gmra.mxu0 %v1667
      %v1731 = vpop.f32.mrf.mxu0
      %v1732 = vadd.f32 %v1649, %v1731
      %1733 = vmatmul.f32.gmra.mxu0 %v1670
      %v1734 = vpop.f32.mrf.mxu0
      %v1735 = vadd.f32 %v1649, %v1734
      %1736 = vmatmul.f32.gmra.mxu0 %v1673
      %v1737 = vpop.f32.mrf.mxu0
      %v1738 = vadd.f32 %v1649, %v1737
      %1739 = vmatmul.f32.gmra.mxu0 %v1676
      %v1740 = vpop.f32.mrf.mxu0
      %v1741 = vadd.f32 %v1649, %v1740
      %1742 = vmatmul.f32.gmra.mxu0 %v1679
      %v1743 = vpop.f32.mrf.mxu0
      %v1744 = vadd.f32 %v1649, %v1743
      %1745 = vmatmul.f32.gmra.mxu0 %v1682
      %v1746 = vpop.f32.mrf.mxu0
      %v1747 = vadd.f32 %v1649, %v1746
      %1748 = vmatmul.f32.gmra.mxu0 %v1685
      %v1749 = vpop.f32.mrf.mxu0
      %v1750 = vadd.f32 %v1649, %v1749
      %1751 = vmatmul.f32.gmra.mxu0 %v1688
      %v1752 = vpop.f32.mrf.mxu0
      %v1753 = vadd.f32 %v1649, %v1752
      %1754 = vmatmul.f32.gmra.mxu0 %v1691
      %v1755 = vpop.f32.mrf.mxu0
      %v1756 = vadd.f32 %v1649, %v1755
      %1757 = vmatmul.f32.gmra.mxu0 %v1694
      %v1758 = vpop.f32.mrf.mxu0
      %v1759 = vadd.f32 %v1649, %v1758
      %1760 = vmatmul.f32.gmra.mxu0 %v1697
      %v1761 = vpop.f32.mrf.mxu0
      %v1762 = vadd.f32 %v1649, %v1761
      %1763 = vdwg.mxu0
      %vm1764 = vcmask 31744
      %1765 = vst.msk [vmem:[%s334] sm:$0xff] %vm1764, %v1717
      %1766 = vst.msk [vmem:[%s334 + $0x8] sm:$0xff] %vm1764, %v1720
      %1767 = vst.msk [vmem:[%s334 + $0x10] sm:$0xff] %vm1764, %v1723
      %1768 = vst.msk [vmem:[%s334 + $0x18] sm:$0xff] %vm1764, %v1726
      %1769 = vst.msk [vmem:[%s334 + $0x20] sm:$0xff] %vm1764, %v1729
      %1770 = vst.msk [vmem:[%s334 + $0x28] sm:$0xff] %vm1764, %v1732
      %1771 = vst.msk [vmem:[%s334 + $0x30] sm:$0xff] %vm1764, %v1735
      %1772 = vst.msk [vmem:[%s334 + $0x38] sm:$0xff] %vm1764, %v1738
      %1773 = vst.msk [vmem:[%s334 + $0x40] sm:$0xff] %vm1764, %v1741
      %1774 = vst.msk [vmem:[%s334 + $0x48] sm:$0xff] %vm1764, %v1744
      %1775 = vst.msk [vmem:[%s334 + $0x50] sm:$0xff] %vm1764, %v1747
      %1776 = vst.msk [vmem:[%s334 + $0x58] sm:$0xff] %vm1764, %v1750
      %1777 = vst.msk [vmem:[%s334 + $0x60] sm:$0xff] %vm1764, %v1753
      %1778 = vst.msk [vmem:[%s334 + $0x68] sm:$0xff] %vm1764, %v1756
      %1779 = vst.msk [vmem:[%s334 + $0x70] sm:$0xff] %vm1764, %v1759
      %1780 = vst.msk [vmem:[%s334 + $0x78] sm:$0xff] %vm1764, %v1762
      %s1781 = smul.u32 16, %s20
      %p1782 = scmp.lt.s32.totalorder %s1781, 31
      %s1783 = scalar_select %p1782, %s1781, 31
      %s1784 = smul.addr %s1783, 8
      %s1785 = scalar_lea.vmem %s9, %s1784
      // Predicated region
      $region57: #{tpu_custom_call.1} parent=55 // pred_check
        %p1786 = pneg %p232
      $region58: #{tpu_custom_call.1} parent=55 // pred_check_branch
        %1788 = sbr.rel (%p1786) target = $region60
      $region59: #{tpu_custom_call.1} parent=55 // pred_region
        %s1789 = smul.u32 16, %s20
      $region60: #{tpu_custom_call.1} parent=55 // pred_fallthru
        _
    $region56: #{tpu_custom_call.1} parent=5 // pred_fallthru
      _
    %p1790 = scmp.le.s32.totalorder 2, %s15
    // Predicated region
    $region61: #{tpu_custom_call.1} parent=5 // pred_check
      %p1791 = pneg %p1790
    $region62: #{tpu_custom_call.1} parent=5 // pred_check_branch
      %1793 = sbr.rel (%p1791) target = $region64
    $region63: #{tpu_custom_call.1} parent=5 // pred_region
      %s1794 = ssub.s32 %s15, 2
      // Predicated region
      $region65: #{tpu_custom_call.1} parent=63 // pred_check
        %p1795 = pneg %p238
      $region66: #{tpu_custom_call.1} parent=63 // pred_check_branch
        %1797 = sbr.rel (%p1795) target = $region68
      $region67: #{tpu_custom_call.1} parent=63 // pred_region
        %s1798 = smul.u32 16, %s21
        %p1799 = scmp.lt.s32.totalorder %s1798, 31
        %s1800 = scalar_select %p1799, %s1798, 31
        %s1801 = smul.addr %s1800, 8
        %s1802 = scalar_lea.vmem %s9, %s1801
      $region68: #{tpu_custom_call.1} parent=63 // pred_fallthru
        _
    $region64: #{tpu_custom_call.1} parent=5 // pred_fallthru
      _
  $region6: #{tpu_custom_call.1} parent=0 // loop_footer
    %s19 = sadd.s32 1, %s15
  $region7: #{tpu_custom_call.1} parent=0 // loop_footer_branch
    %14 = sbr.rel target = $region3
  $region8: #{tpu_custom_call.1} parent=0 // loop_exit
    _

</llo_original>
